<compile_context>
chip_gen: v7x
topology: tpu7x:2x2x1
jax: 0.10.0
libtpu: 0.0.40
codegen_flags: <defaults>
</compile_context>

<pallas_src>
import numpy as np
import jax
import jax.numpy as jnp
from jax import lax
from jax.experimental import pallas as pl
from jax.experimental.pallas import tpu as pltpu  # noqa: F401  (no grid/scratch needed at this size)


# ----------------------------- Fused Pallas kernel -----------------------------

def _make_fused_kernel(T, B, H):
    """proj + bidirectional recurrence + embedding, single invocation."""
    H4 = 4 * H

    def kernel(x_ref, wx_ref, bx_ref, wh_ref, we_ref, be_ref, out_ref):
        # x_ref:  (T*B, nIn)
        # wx_ref: (nIn, 8H) = [W_ih_f.T | W_ih_b.T]
        # bx_ref: (1, 8H)   = [b_ih_f+b_hh_f | b_ih_b+b_hh_b]
        # wh_ref: (2H, 8H)  block-diagonal recurrent weight ([:H,:4H]=W_hh_f.T, [H:,4H:]=W_hh_b.T)
        # we_ref: (2H, nOut) = W_emb.T ;  be_ref: (1, nOut)
        # out_ref: (T*B, nOut)

        # ---- Stage 1: input projection for BOTH directions, bias folded ----
        gx = (jnp.dot(x_ref[...], wx_ref[...], preferred_element_type=jnp.float32)
              + bx_ref[...])                                   # (T*B, 8H)

        wh = wh_ref[...]                                       # hoisted out of the loop

        def cell(gates, c):
            # gates: (B, 4H) pre-activation, PyTorch gate order (i, f, g, o)
            s = jax.nn.sigmoid(gates)                          # whole-slab sigmoid
            th = jnp.tanh(gates)                               # whole-slab tanh
            i = s[:, 0:H]
            f = s[:, H:2 * H]
            g = th[:, 2 * H:3 * H]
            o = s[:, 3 * H:4 * H]
            c_new = f * c + i * g
            h_new = o * jnp.tanh(c_new)
            return h_new, c_new

        # ---- Stage 2: fused fwd+bwd recurrence (static, fully unrolled) ----
        h = jnp.zeros((B, 2 * H), jnp.float32)                 # [h_f | h_b]
        c_f = jnp.zeros((B, H), jnp.float32)
        c_b = jnp.zeros((B, H), jnp.float32)
        hf_steps = []
        hb_steps = []
        for t in range(T):                                     # static unroll, T small
            gx_f = gx[t * B:(t + 1) * B, :H4]                  # forward reads time t
            gx_b = gx[(T - 1 - t) * B:(T - t) * B, H4:]        # backward reads time T-1-t
            gate_x = jnp.concatenate([gx_f, gx_b], axis=1)     # (B, 8H)
            # single block-diagonal recurrent matmul for both directions
            gates = gate_x + jnp.dot(h, wh, preferred_element_type=jnp.float32)
            h_f, c_f = cell(gates[:, :H4], c_f)
            h_b, c_b = cell(gates[:, H4:], c_b)
            h = jnp.concatenate([h_f, h_b], axis=1)            # (B, 2H) carry
            hf_steps.append(h_f)
            hb_steps.append(h_b)

        # ---- Stage 3: embedding (single matmul, no HBM concat) ----
        # hb_steps[t] is the backward hidden for time T-1-t -> reverse the list.
        h_fwd = jnp.concatenate(hf_steps, axis=0)              # (T*B, H), natural time
        h_bwd = jnp.concatenate(hb_steps[::-1], axis=0)        # (T*B, H), natural time
        rec = jnp.concatenate([h_fwd, h_bwd], axis=1)          # (T*B, 2H)
        out_ref[...] = (jnp.dot(rec, we_ref[...], preferred_element_type=jnp.float32)
                        + be_ref[...])

    return kernel


# ----------------------------- Param prep (one-time, outside hot path) -----------------------------

def prepare_params(p):
    """Fold PyTorch-layout LSTM/Linear params into kernel-friendly layouts once."""
    H = p["w_hh_f"].shape[1]
    wx = jnp.concatenate([p["w_ih_f"].T, p["w_ih_b"].T], axis=1)            # (nIn, 8H)
    bx = jnp.concatenate([p["b_ih_f"] + p["b_hh_f"],
                          p["b_ih_b"] + p["b_hh_b"]])[None, :]              # (1, 8H)
    wh = jnp.zeros((2 * H, 8 * H), jnp.float32)                             # block-diagonal
    wh = wh.at[:H, :4 * H].set(p["w_hh_f"].T)
    wh = wh.at[H:, 4 * H:].set(p["w_hh_b"].T)
    we = p["w_emb"].T                                                       # (2H, nOut)
    be = p["b_emb"][None, :]                                                # (1, nOut)
    return {"wx": wx, "bx": bx, "wh": wh, "we": we, "be": be, "H": H}


# ----------------------------- Wrapper -----------------------------

def bidirectional_lstm_forward(x, prepped):
    """Full module forward.  x: (T, B, nIn) -> (T, B, nOut)."""
    T, B, n_in = x.shape
    H = prepped["we"].shape[0] // 2
    n_out = prepped["we"].shape[1]

    x2d = x.reshape(T * B, n_in)
    out2d = pl.pallas_call(
        _make_fused_kernel(T, B, H),
        out_shape=jax.ShapeDtypeStruct((T * B, n_out), jnp.float32),
    )(x2d, prepped["wx"], prepped["bx"], prepped["wh"], prepped["we"], prepped["be"])
    return out2d.reshape(T, B, n_out)


# ----------------------------- Pure-JAX reference -----------------------------

def _lstm_ref_dir(x, w_ih, w_hh, b_ih, b_hh):
    H = w_hh.shape[1]
    B = x.shape[1]

    def step(carry, xt):
        h, c = carry
        gates = xt @ w_ih.T + b_ih + h @ w_hh.T + b_hh
        i = jax.nn.sigmoid(gates[:, :H])
        f = jax.nn.sigmoid(gates[:, H:2 * H])
        g = jnp.tanh(gates[:, 2 * H:3 * H])
        o = jax.nn.sigmoid(gates[:, 3 * H:])
        c = f * c + i * g
        h = o * jnp.tanh(c)
        return (h, c), h

    init = (jnp.zeros((B, H), jnp.float32), jnp.zeros((B, H), jnp.float32))
    _, hs = lax.scan(step, init, x)
    return hs


def reference_forward(x, p):
    h_f = _lstm_ref_dir(x, p["w_ih_f"], p["w_hh_f"], p["b_ih_f"], p["b_hh_f"])
    h_b = _lstm_ref_dir(x[::-1], p["w_ih_b"], p["w_hh_b"], p["b_ih_b"], p["b_hh_b"])[::-1]
    rec = jnp.concatenate([h_f, h_b], axis=-1)
    T, B, two_h = rec.shape
    out = rec.reshape(T * B, two_h) @ p["w_emb"].T + p["b_emb"]
    return out.reshape(T, B, -1)


# ----------------------------- Main -----------------------------

if __name__ == "__main__":
    # Shapes consistent with the module's forward: input is (T, b, nIn).
    T, B, N_IN, N_HIDDEN, N_OUT = 8, 2, 32, 32, 16

    key = jax.random.PRNGKey(0)
    keys = jax.random.split(key, 12)
    std = 1.0 / np.sqrt(N_HIDDEN)
    u = lambda k, shape: jax.random.uniform(k, shape, jnp.float32, -std, std)

    # PyTorch-style parameter shapes (gate order i, f, g, o).
    params = {
        "w_ih_f": u(keys[0], (4 * N_HIDDEN, N_IN)),
        "w_hh_f": u(keys[1], (4 * N_HIDDEN, N_HIDDEN)),
        "b_ih_f": u(keys[2], (4 * N_HIDDEN,)),
        "b_hh_f": u(keys[3], (4 * N_HIDDEN,)),
        "w_ih_b": u(keys[4], (4 * N_HIDDEN, N_IN)),
        "w_hh_b": u(keys[5], (4 * N_HIDDEN, N_HIDDEN)),
        "b_ih_b": u(keys[6], (4 * N_HIDDEN,)),
        "b_hh_b": u(keys[7], (4 * N_HIDDEN,)),
        "w_emb": u(keys[8], (N_OUT, 2 * N_HIDDEN)),
        "b_emb": u(keys[9], (N_OUT,)),
    }

    x = jax.random.normal(keys[10], (T, B, N_IN), jnp.float32)

    # One-time weight-layout preparation, hoisted out of the hot forward path.
    prepped = jax.tree_util.tree_map(
        lambda a: jax.block_until_ready(a),
        {k: v for k, v in prepare_params(params).items() if k != "H"})

    forward = jax.jit(bidirectional_lstm_forward)
    out = jax.block_until_ready(forward(x, prepped))

    assert out.shape == (T, B, N_OUT), out.shape

    with jax.default_matmul_precision("highest"):
        ref = jax.block_until_ready(reference_forward(x, params))

    np.testing.assert_allclose(np.asarray(out), np.asarray(ref),
                               rtol=1e-4, atol=1e-4)

    print("KERNEL_OK")
</pallas_src>

<mosaic_0001>
module attributes {stable_mosaic.version = 11 : i64} {
  func.func @kernel(%arg0: memref<16x32xf32, #tpu.memory_space<vmem>>, %arg1: memref<32x256xf32, #tpu.memory_space<vmem>>, %arg2: memref<1x256xf32, #tpu.memory_space<vmem>>, %arg3: memref<64x256xf32, #tpu.memory_space<vmem>>, %arg4: memref<64x16xf32, #tpu.memory_space<vmem>>, %arg5: memref<1x16xf32, #tpu.memory_space<vmem>>, %arg6: memref<16x16xf32, #tpu.memory_space<vmem>>) attributes {dimension_semantics = [], scalar_prefetch = 0 : i64, scratch_operands = 0 : i64, tpu.core_type = #tpu.core_type<tc>} {
    %c0 = arith.constant 0 : index
    %c0_0 = arith.constant 0 : index
    %0 = vector.load %arg0[%c0, %c0_0] : memref<16x32xf32, #tpu.memory_space<vmem>>, vector<16x32xf32>
    %c0_1 = arith.constant 0 : index
    %c0_2 = arith.constant 0 : index
    %1 = vector.load %arg1[%c0_1, %c0_2] : memref<32x256xf32, #tpu.memory_space<vmem>>, vector<32x256xf32>
    %cst = arith.constant dense<0.000000e+00> : vector<16x256xf32>
    %2 = tpu.matmul %0, %1, %cst {dimension_numbers = #tpu.dot_dimension_numbers<[1], [0], [0], [1], [0, 0, 1, 1], [], []>} : vector<16x32xf32>, vector<32x256xf32>, vector<16x256xf32> -> vector<16x256xf32>
    %c0_3 = arith.constant 0 : index
    %c0_4 = arith.constant 0 : index
    %3 = vector.load %arg2[%c0_3, %c0_4] : memref<1x256xf32, #tpu.memory_space<vmem>>, vector<1x256xf32>
    %4 = vector.broadcast %3 : vector<1x256xf32> to vector<16x256xf32>
    %5 = arith.addf %2, %4 : vector<16x256xf32>
    %c0_5 = arith.constant 0 : index
    %c0_6 = arith.constant 0 : index
    %6 = vector.load %arg3[%c0_5, %c0_6] : memref<64x256xf32, #tpu.memory_space<vmem>>, vector<64x256xf32>
    %cst_7 = arith.constant 0.000000e+00 : f32
    %7 = vector.broadcast %cst_7 : f32 to vector<2x64xf32>
    %cst_8 = arith.constant 0.000000e+00 : f32
    %8 = vector.broadcast %cst_8 : f32 to vector<2x32xf32>
    %cst_9 = arith.constant 0.000000e+00 : f32
    %9 = vector.broadcast %cst_9 : f32 to vector<2x32xf32>
    %10 = vector.extract_strided_slice %5 {offsets = [0, 0], sizes = [2, 128], strides = [1, 1]} : vector<16x256xf32> to vector<2x128xf32>
    %11 = vector.extract_strided_slice %5 {offsets = [14, 128], sizes = [2, 128], strides = [1, 1]} : vector<16x256xf32> to vector<2x128xf32>
    %12 = tpu.concatenate %10, %11 in 1 : vector<2x128xf32>, vector<2x128xf32> -> vector<2x256xf32>
    %cst_10 = arith.constant dense<0.000000e+00> : vector<2x256xf32>
    %13 = tpu.matmul %7, %6, %cst_10 {dimension_numbers = #tpu.dot_dimension_numbers<[1], [0], [0], [1], [0, 0, 1, 1], [], []>} : vector<2x64xf32>, vector<64x256xf32>, vector<2x256xf32> -> vector<2x256xf32>
    %14 = arith.addf %12, %13 : vector<2x256xf32>
    %15 = vector.extract_strided_slice %14 {offsets = [0, 0], sizes = [2, 128], strides = [1, 1]} : vector<2x256xf32> to vector<2x128xf32>
    %16 = arith.negf %15 : vector<2x128xf32>
    %17 = math.exp %16 : vector<2x128xf32>
    %cst_11 = arith.constant 1.000000e+00 : f32
    %18 = vector.broadcast %cst_11 : f32 to vector<2x128xf32>
    %19 = arith.addf %18, %17 : vector<2x128xf32>
    %20 = arith.divf %18, %19 : vector<2x128xf32>
    %21 = math.tanh %15 : vector<2x128xf32>
    %22 = vector.extract_strided_slice %20 {offsets = [0, 0], sizes = [2, 32], strides = [1, 1]} : vector<2x128xf32> to vector<2x32xf32>
    %23 = vector.extract_strided_slice %20 {offsets = [0, 32], sizes = [2, 32], strides = [1, 1]} : vector<2x128xf32> to vector<2x32xf32>
    %24 = vector.extract_strided_slice %21 {offsets = [0, 64], sizes = [2, 32], strides = [1, 1]} : vector<2x128xf32> to vector<2x32xf32>
    %25 = vector.extract_strided_slice %20 {offsets = [0, 96], sizes = [2, 32], strides = [1, 1]} : vector<2x128xf32> to vector<2x32xf32>
    %26 = arith.mulf %23, %8 : vector<2x32xf32>
    %27 = arith.mulf %22, %24 : vector<2x32xf32>
    %28 = arith.addf %26, %27 : vector<2x32xf32>
    %29 = math.tanh %28 : vector<2x32xf32>
    %30 = arith.mulf %25, %29 : vector<2x32xf32>
    %31 = vector.extract_strided_slice %14 {offsets = [0, 128], sizes = [2, 128], strides = [1, 1]} : vector<2x256xf32> to vector<2x128xf32>
    %32 = arith.negf %31 : vector<2x128xf32>
    %33 = math.exp %32 : vector<2x128xf32>
    %cst_12 = arith.constant 1.000000e+00 : f32
    %34 = vector.broadcast %cst_12 : f32 to vector<2x128xf32>
    %35 = arith.addf %34, %33 : vector<2x128xf32>
    %36 = arith.divf %34, %35 : vector<2x128xf32>
    %37 = math.tanh %31 : vector<2x128xf32>
    %38 = vector.extract_strided_slice %36 {offsets = [0, 0], sizes = [2, 32], strides = [1, 1]} : vector<2x128xf32> to vector<2x32xf32>
    %39 = vector.extract_strided_slice %36 {offsets = [0, 32], sizes = [2, 32], strides = [1, 1]} : vector<2x128xf32> to vector<2x32xf32>
    %40 = vector.extract_strided_slice %37 {offsets = [0, 64], sizes = [2, 32], strides = [1, 1]} : vector<2x128xf32> to vector<2x32xf32>
    %41 = vector.extract_strided_slice %36 {offsets = [0, 96], sizes = [2, 32], strides = [1, 1]} : vector<2x128xf32> to vector<2x32xf32>
    %42 = arith.mulf %39, %9 : vector<2x32xf32>
    %43 = arith.mulf %38, %40 : vector<2x32xf32>
    %44 = arith.addf %42, %43 : vector<2x32xf32>
    %45 = math.tanh %44 : vector<2x32xf32>
    %46 = arith.mulf %41, %45 : vector<2x32xf32>
    %47 = tpu.concatenate %30, %46 in 1 : vector<2x32xf32>, vector<2x32xf32> -> vector<2x64xf32>
    %48 = vector.extract_strided_slice %5 {offsets = [2, 0], sizes = [2, 128], strides = [1, 1]} : vector<16x256xf32> to vector<2x128xf32>
    %49 = vector.extract_strided_slice %5 {offsets = [12, 128], sizes = [2, 128], strides = [1, 1]} : vector<16x256xf32> to vector<2x128xf32>
    %50 = tpu.concatenate %48, %49 in 1 : vector<2x128xf32>, vector<2x128xf32> -> vector<2x256xf32>
    %cst_13 = arith.constant dense<0.000000e+00> : vector<2x256xf32>
    %51 = tpu.matmul %47, %6, %cst_13 {dimension_numbers = #tpu.dot_dimension_numbers<[1], [0], [0], [1], [0, 0, 1, 1], [], []>} : vector<2x64xf32>, vector<64x256xf32>, vector<2x256xf32> -> vector<2x256xf32>
    %52 = arith.addf %50, %51 : vector<2x256xf32>
    %53 = vector.extract_strided_slice %52 {offsets = [0, 0], sizes = [2, 128], strides = [1, 1]} : vector<2x256xf32> to vector<2x128xf32>
    %54 = arith.negf %53 : vector<2x128xf32>
    %55 = math.exp %54 : vector<2x128xf32>
    %cst_14 = arith.constant 1.000000e+00 : f32
    %56 = vector.broadcast %cst_14 : f32 to vector<2x128xf32>
    %57 = arith.addf %56, %55 : vector<2x128xf32>
    %58 = arith.divf %56, %57 : vector<2x128xf32>
    %59 = math.tanh %53 : vector<2x128xf32>
    %60 = vector.extract_strided_slice %58 {offsets = [0, 0], sizes = [2, 32], strides = [1, 1]} : vector<2x128xf32> to vector<2x32xf32>
    %61 = vector.extract_strided_slice %58 {offsets = [0, 32], sizes = [2, 32], strides = [1, 1]} : vector<2x128xf32> to vector<2x32xf32>
    %62 = vector.extract_strided_slice %59 {offsets = [0, 64], sizes = [2, 32], strides = [1, 1]} : vector<2x128xf32> to vector<2x32xf32>
    %63 = vector.extract_strided_slice %58 {offsets = [0, 96], sizes = [2, 32], strides = [1, 1]} : vector<2x128xf32> to vector<2x32xf32>
    %64 = arith.mulf %61, %28 : vector<2x32xf32>
    %65 = arith.mulf %60, %62 : vector<2x32xf32>
    %66 = arith.addf %64, %65 : vector<2x32xf32>
    %67 = math.tanh %66 : vector<2x32xf32>
    %68 = arith.mulf %63, %67 : vector<2x32xf32>
    %69 = vector.extract_strided_slice %52 {offsets = [0, 128], sizes = [2, 128], strides = [1, 1]} : vector<2x256xf32> to vector<2x128xf32>
    %70 = arith.negf %69 : vector<2x128xf32>
    %71 = math.exp %70 : vector<2x128xf32>
    %cst_15 = arith.constant 1.000000e+00 : f32
    %72 = vector.broadcast %cst_15 : f32 to vector<2x128xf32>
    %73 = arith.addf %72, %71 : vector<2x128xf32>
    %74 = arith.divf %72, %73 : vector<2x128xf32>
    %75 = math.tanh %69 : vector<2x128xf32>
    %76 = vector.extract_strided_slice %74 {offsets = [0, 0], sizes = [2, 32], strides = [1, 1]} : vector<2x128xf32> to vector<2x32xf32>
    %77 = vector.extract_strided_slice %74 {offsets = [0, 32], sizes = [2, 32], strides = [1, 1]} : vector<2x128xf32> to vector<2x32xf32>
    %78 = vector.extract_strided_slice %75 {offsets = [0, 64], sizes = [2, 32], strides = [1, 1]} : vector<2x128xf32> to vector<2x32xf32>
    %79 = vector.extract_strided_slice %74 {offsets = [0, 96], sizes = [2, 32], strides = [1, 1]} : vector<2x128xf32> to vector<2x32xf32>
    %80 = arith.mulf %77, %44 : vector<2x32xf32>
    %81 = arith.mulf %76, %78 : vector<2x32xf32>
    %82 = arith.addf %80, %81 : vector<2x32xf32>
    %83 = math.tanh %82 : vector<2x32xf32>
    %84 = arith.mulf %79, %83 : vector<2x32xf32>
    %85 = tpu.concatenate %68, %84 in 1 : vector<2x32xf32>, vector<2x32xf32> -> vector<2x64xf32>
    %86 = vector.extract_strided_slice %5 {offsets = [4, 0], sizes = [2, 128], strides = [1, 1]} : vector<16x256xf32> to vector<2x128xf32>
    %87 = vector.extract_strided_slice %5 {offsets = [10, 128], sizes = [2, 128], strides = [1, 1]} : vector<16x256xf32> to vector<2x128xf32>
    %88 = tpu.concatenate %86, %87 in 1 : vector<2x128xf32>, vector<2x128xf32> -> vector<2x256xf32>
    %cst_16 = arith.constant dense<0.000000e+00> : vector<2x256xf32>
    %89 = tpu.matmul %85, %6, %cst_16 {dimension_numbers = #tpu.dot_dimension_numbers<[1], [0], [0], [1], [0, 0, 1, 1], [], []>} : vector<2x64xf32>, vector<64x256xf32>, vector<2x256xf32> -> vector<2x256xf32>
    %90 = arith.addf %88, %89 : vector<2x256xf32>
    %91 = vector.extract_strided_slice %90 {offsets = [0, 0], sizes = [2, 128], strides = [1, 1]} : vector<2x256xf32> to vector<2x128xf32>
    %92 = arith.negf %91 : vector<2x128xf32>
    %93 = math.exp %92 : vector<2x128xf32>
    %cst_17 = arith.constant 1.000000e+00 : f32
    %94 = vector.broadcast %cst_17 : f32 to vector<2x128xf32>
    %95 = arith.addf %94, %93 : vector<2x128xf32>
    %96 = arith.divf %94, %95 : vector<2x128xf32>
    %97 = math.tanh %91 : vector<2x128xf32>
    %98 = vector.extract_strided_slice %96 {offsets = [0, 0], sizes = [2, 32], strides = [1, 1]} : vector<2x128xf32> to vector<2x32xf32>
    %99 = vector.extract_strided_slice %96 {offsets = [0, 32], sizes = [2, 32], strides = [1, 1]} : vector<2x128xf32> to vector<2x32xf32>
    %100 = vector.extract_strided_slice %97 {offsets = [0, 64], sizes = [2, 32], strides = [1, 1]} : vector<2x128xf32> to vector<2x32xf32>
    %101 = vector.extract_strided_slice %96 {offsets = [0, 96], sizes = [2, 32], strides = [1, 1]} : vector<2x128xf32> to vector<2x32xf32>
    %102 = arith.mulf %99, %66 : vector<2x32xf32>
    %103 = arith.mulf %98, %100 : vector<2x32xf32>
    %104 = arith.addf %102, %103 : vector<2x32xf32>
    %105 = math.tanh %104 : vector<2x32xf32>
    %106 = arith.mulf %101, %105 : vector<2x32xf32>
    %107 = vector.extract_strided_slice %90 {offsets = [0, 128], sizes = [2, 128], strides = [1, 1]} : vector<2x256xf32> to vector<2x128xf32>
    %108 = arith.negf %107 : vector<2x128xf32>
    %109 = math.exp %108 : vector<2x128xf32>
    %cst_18 = arith.constant 1.000000e+00 : f32
    %110 = vector.broadcast %cst_18 : f32 to vector<2x128xf32>
    %111 = arith.addf %110, %109 : vector<2x128xf32>
    %112 = arith.divf %110, %111 : vector<2x128xf32>
    %113 = math.tanh %107 : vector<2x128xf32>
    %114 = vector.extract_strided_slice %112 {offsets = [0, 0], sizes = [2, 32], strides = [1, 1]} : vector<2x128xf32> to vector<2x32xf32>
    %115 = vector.extract_strided_slice %112 {offsets = [0, 32], sizes = [2, 32], strides = [1, 1]} : vector<2x128xf32> to vector<2x32xf32>
    %116 = vector.extract_strided_slice %113 {offsets = [0, 64], sizes = [2, 32], strides = [1, 1]} : vector<2x128xf32> to vector<2x32xf32>
    %117 = vector.extract_strided_slice %112 {offsets = [0, 96], sizes = [2, 32], strides = [1, 1]} : vector<2x128xf32> to vector<2x32xf32>
    %118 = arith.mulf %115, %82 : vector<2x32xf32>
    %119 = arith.mulf %114, %116 : vector<2x32xf32>
    %120 = arith.addf %118, %119 : vector<2x32xf32>
    %121 = math.tanh %120 : vector<2x32xf32>
    %122 = arith.mulf %117, %121 : vector<2x32xf32>
    %123 = tpu.concatenate %106, %122 in 1 : vector<2x32xf32>, vector<2x32xf32> -> vector<2x64xf32>
    %124 = vector.extract_strided_slice %5 {offsets = [6, 0], sizes = [2, 128], strides = [1, 1]} : vector<16x256xf32> to vector<2x128xf32>
    %125 = vector.extract_strided_slice %5 {offsets = [8, 128], sizes = [2, 128], strides = [1, 1]} : vector<16x256xf32> to vector<2x128xf32>
    %126 = tpu.concatenate %124, %125 in 1 : vector<2x128xf32>, vector<2x128xf32> -> vector<2x256xf32>
    %cst_19 = arith.constant dense<0.000000e+00> : vector<2x256xf32>
    %127 = tpu.matmul %123, %6, %cst_19 {dimension_numbers = #tpu.dot_dimension_numbers<[1], [0], [0], [1], [0, 0, 1, 1], [], []>} : vector<2x64xf32>, vector<64x256xf32>, vector<2x256xf32> -> vector<2x256xf32>
    %128 = arith.addf %126, %127 : vector<2x256xf32>
    %129 = vector.extract_strided_slice %128 {offsets = [0, 0], sizes = [2, 128], strides = [1, 1]} : vector<2x256xf32> to vector<2x128xf32>
    %130 = arith.negf %129 : vector<2x128xf32>
    %131 = math.exp %130 : vector<2x128xf32>
    %cst_20 = arith.constant 1.000000e+00 : f32
    %132 = vector.broadcast %cst_20 : f32 to vector<2x128xf32>
    %133 = arith.addf %132, %131 : vector<2x128xf32>
    %134 = arith.divf %132, %133 : vector<2x128xf32>
    %135 = math.tanh %129 : vector<2x128xf32>
    %136 = vector.extract_strided_slice %134 {offsets = [0, 0], sizes = [2, 32], strides = [1, 1]} : vector<2x128xf32> to vector<2x32xf32>
    %137 = vector.extract_strided_slice %134 {offsets = [0, 32], sizes = [2, 32], strides = [1, 1]} : vector<2x128xf32> to vector<2x32xf32>
    %138 = vector.extract_strided_slice %135 {offsets = [0, 64], sizes = [2, 32], strides = [1, 1]} : vector<2x128xf32> to vector<2x32xf32>
    %139 = vector.extract_strided_slice %134 {offsets = [0, 96], sizes = [2, 32], strides = [1, 1]} : vector<2x128xf32> to vector<2x32xf32>
    %140 = arith.mulf %137, %104 : vector<2x32xf32>
    %141 = arith.mulf %136, %138 : vector<2x32xf32>
    %142 = arith.addf %140, %141 : vector<2x32xf32>
    %143 = math.tanh %142 : vector<2x32xf32>
    %144 = arith.mulf %139, %143 : vector<2x32xf32>
    %145 = vector.extract_strided_slice %128 {offsets = [0, 128], sizes = [2, 128], strides = [1, 1]} : vector<2x256xf32> to vector<2x128xf32>
    %146 = arith.negf %145 : vector<2x128xf32>
    %147 = math.exp %146 : vector<2x128xf32>
    %cst_21 = arith.constant 1.000000e+00 : f32
    %148 = vector.broadcast %cst_21 : f32 to vector<2x128xf32>
    %149 = arith.addf %148, %147 : vector<2x128xf32>
    %150 = arith.divf %148, %149 : vector<2x128xf32>
    %151 = math.tanh %145 : vector<2x128xf32>
    %152 = vector.extract_strided_slice %150 {offsets = [0, 0], sizes = [2, 32], strides = [1, 1]} : vector<2x128xf32> to vector<2x32xf32>
    %153 = vector.extract_strided_slice %150 {offsets = [0, 32], sizes = [2, 32], strides = [1, 1]} : vector<2x128xf32> to vector<2x32xf32>
    %154 = vector.extract_strided_slice %151 {offsets = [0, 64], sizes = [2, 32], strides = [1, 1]} : vector<2x128xf32> to vector<2x32xf32>
    %155 = vector.extract_strided_slice %150 {offsets = [0, 96], sizes = [2, 32], strides = [1, 1]} : vector<2x128xf32> to vector<2x32xf32>
    %156 = arith.mulf %153, %120 : vector<2x32xf32>
    %157 = arith.mulf %152, %154 : vector<2x32xf32>
    %158 = arith.addf %156, %157 : vector<2x32xf32>
    %159 = math.tanh %158 : vector<2x32xf32>
    %160 = arith.mulf %155, %159 : vector<2x32xf32>
    %161 = tpu.concatenate %144, %160 in 1 : vector<2x32xf32>, vector<2x32xf32> -> vector<2x64xf32>
    %162 = vector.extract_strided_slice %5 {offsets = [8, 0], sizes = [2, 128], strides = [1, 1]} : vector<16x256xf32> to vector<2x128xf32>
    %163 = vector.extract_strided_slice %5 {offsets = [6, 128], sizes = [2, 128], strides = [1, 1]} : vector<16x256xf32> to vector<2x128xf32>
    %164 = tpu.concatenate %162, %163 in 1 : vector<2x128xf32>, vector<2x128xf32> -> vector<2x256xf32>
    %cst_22 = arith.constant dense<0.000000e+00> : vector<2x256xf32>
    %165 = tpu.matmul %161, %6, %cst_22 {dimension_numbers = #tpu.dot_dimension_numbers<[1], [0], [0], [1], [0, 0, 1, 1], [], []>} : vector<2x64xf32>, vector<64x256xf32>, vector<2x256xf32> -> vector<2x256xf32>
    %166 = arith.addf %164, %165 : vector<2x256xf32>
    %167 = vector.extract_strided_slice %166 {offsets = [0, 0], sizes = [2, 128], strides = [1, 1]} : vector<2x256xf32> to vector<2x128xf32>
    %168 = arith.negf %167 : vector<2x128xf32>
    %169 = math.exp %168 : vector<2x128xf32>
    %cst_23 = arith.constant 1.000000e+00 : f32
    %170 = vector.broadcast %cst_23 : f32 to vector<2x128xf32>
    %171 = arith.addf %170, %169 : vector<2x128xf32>
    %172 = arith.divf %170, %171 : vector<2x128xf32>
    %173 = math.tanh %167 : vector<2x128xf32>
    %174 = vector.extract_strided_slice %172 {offsets = [0, 0], sizes = [2, 32], strides = [1, 1]} : vector<2x128xf32> to vector<2x32xf32>
    %175 = vector.extract_strided_slice %172 {offsets = [0, 32], sizes = [2, 32], strides = [1, 1]} : vector<2x128xf32> to vector<2x32xf32>
    %176 = vector.extract_strided_slice %173 {offsets = [0, 64], sizes = [2, 32], strides = [1, 1]} : vector<2x128xf32> to vector<2x32xf32>
    %177 = vector.extract_strided_slice %172 {offsets = [0, 96], sizes = [2, 32], strides = [1, 1]} : vector<2x128xf32> to vector<2x32xf32>
    %178 = arith.mulf %175, %142 : vector<2x32xf32>
    %179 = arith.mulf %174, %176 : vector<2x32xf32>
    %180 = arith.addf %178, %179 : vector<2x32xf32>
    %181 = math.tanh %180 : vector<2x32xf32>
    %182 = arith.mulf %177, %181 : vector<2x32xf32>
    %183 = vector.extract_strided_slice %166 {offsets = [0, 128], sizes = [2, 128], strides = [1, 1]} : vector<2x256xf32> to vector<2x128xf32>
    %184 = arith.negf %183 : vector<2x128xf32>
    %185 = math.exp %184 : vector<2x128xf32>
    %cst_24 = arith.constant 1.000000e+00 : f32
    %186 = vector.broadcast %cst_24 : f32 to vector<2x128xf32>
    %187 = arith.addf %186, %185 : vector<2x128xf32>
    %188 = arith.divf %186, %187 : vector<2x128xf32>
    %189 = math.tanh %183 : vector<2x128xf32>
    %190 = vector.extract_strided_slice %188 {offsets = [0, 0], sizes = [2, 32], strides = [1, 1]} : vector<2x128xf32> to vector<2x32xf32>
    %191 = vector.extract_strided_slice %188 {offsets = [0, 32], sizes = [2, 32], strides = [1, 1]} : vector<2x128xf32> to vector<2x32xf32>
    %192 = vector.extract_strided_slice %189 {offsets = [0, 64], sizes = [2, 32], strides = [1, 1]} : vector<2x128xf32> to vector<2x32xf32>
    %193 = vector.extract_strided_slice %188 {offsets = [0, 96], sizes = [2, 32], strides = [1, 1]} : vector<2x128xf32> to vector<2x32xf32>
    %194 = arith.mulf %191, %158 : vector<2x32xf32>
    %195 = arith.mulf %190, %192 : vector<2x32xf32>
    %196 = arith.addf %194, %195 : vector<2x32xf32>
    %197 = math.tanh %196 : vector<2x32xf32>
    %198 = arith.mulf %193, %197 : vector<2x32xf32>
    %199 = tpu.concatenate %182, %198 in 1 : vector<2x32xf32>, vector<2x32xf32> -> vector<2x64xf32>
    %200 = vector.extract_strided_slice %5 {offsets = [10, 0], sizes = [2, 128], strides = [1, 1]} : vector<16x256xf32> to vector<2x128xf32>
    %201 = vector.extract_strided_slice %5 {offsets = [4, 128], sizes = [2, 128], strides = [1, 1]} : vector<16x256xf32> to vector<2x128xf32>
    %202 = tpu.concatenate %200, %201 in 1 : vector<2x128xf32>, vector<2x128xf32> -> vector<2x256xf32>
    %cst_25 = arith.constant dense<0.000000e+00> : vector<2x256xf32>
    %203 = tpu.matmul %199, %6, %cst_25 {dimension_numbers = #tpu.dot_dimension_numbers<[1], [0], [0], [1], [0, 0, 1, 1], [], []>} : vector<2x64xf32>, vector<64x256xf32>, vector<2x256xf32> -> vector<2x256xf32>
    %204 = arith.addf %202, %203 : vector<2x256xf32>
    %205 = vector.extract_strided_slice %204 {offsets = [0, 0], sizes = [2, 128], strides = [1, 1]} : vector<2x256xf32> to vector<2x128xf32>
    %206 = arith.negf %205 : vector<2x128xf32>
    %207 = math.exp %206 : vector<2x128xf32>
    %cst_26 = arith.constant 1.000000e+00 : f32
    %208 = vector.broadcast %cst_26 : f32 to vector<2x128xf32>
    %209 = arith.addf %208, %207 : vector<2x128xf32>
    %210 = arith.divf %208, %209 : vector<2x128xf32>
    %211 = math.tanh %205 : vector<2x128xf32>
    %212 = vector.extract_strided_slice %210 {offsets = [0, 0], sizes = [2, 32], strides = [1, 1]} : vector<2x128xf32> to vector<2x32xf32>
    %213 = vector.extract_strided_slice %210 {offsets = [0, 32], sizes = [2, 32], strides = [1, 1]} : vector<2x128xf32> to vector<2x32xf32>
    %214 = vector.extract_strided_slice %211 {offsets = [0, 64], sizes = [2, 32], strides = [1, 1]} : vector<2x128xf32> to vector<2x32xf32>
    %215 = vector.extract_strided_slice %210 {offsets = [0, 96], sizes = [2, 32], strides = [1, 1]} : vector<2x128xf32> to vector<2x32xf32>
    %216 = arith.mulf %213, %180 : vector<2x32xf32>
    %217 = arith.mulf %212, %214 : vector<2x32xf32>
    %218 = arith.addf %216, %217 : vector<2x32xf32>
    %219 = math.tanh %218 : vector<2x32xf32>
    %220 = arith.mulf %215, %219 : vector<2x32xf32>
    %221 = vector.extract_strided_slice %204 {offsets = [0, 128], sizes = [2, 128], strides = [1, 1]} : vector<2x256xf32> to vector<2x128xf32>
    %222 = arith.negf %221 : vector<2x128xf32>
    %223 = math.exp %222 : vector<2x128xf32>
    %cst_27 = arith.constant 1.000000e+00 : f32
    %224 = vector.broadcast %cst_27 : f32 to vector<2x128xf32>
    %225 = arith.addf %224, %223 : vector<2x128xf32>
    %226 = arith.divf %224, %225 : vector<2x128xf32>
    %227 = math.tanh %221 : vector<2x128xf32>
    %228 = vector.extract_strided_slice %226 {offsets = [0, 0], sizes = [2, 32], strides = [1, 1]} : vector<2x128xf32> to vector<2x32xf32>
    %229 = vector.extract_strided_slice %226 {offsets = [0, 32], sizes = [2, 32], strides = [1, 1]} : vector<2x128xf32> to vector<2x32xf32>
    %230 = vector.extract_strided_slice %227 {offsets = [0, 64], sizes = [2, 32], strides = [1, 1]} : vector<2x128xf32> to vector<2x32xf32>
    %231 = vector.extract_strided_slice %226 {offsets = [0, 96], sizes = [2, 32], strides = [1, 1]} : vector<2x128xf32> to vector<2x32xf32>
    %232 = arith.mulf %229, %196 : vector<2x32xf32>
    %233 = arith.mulf %228, %230 : vector<2x32xf32>
    %234 = arith.addf %232, %233 : vector<2x32xf32>
    %235 = math.tanh %234 : vector<2x32xf32>
    %236 = arith.mulf %231, %235 : vector<2x32xf32>
    %237 = tpu.concatenate %220, %236 in 1 : vector<2x32xf32>, vector<2x32xf32> -> vector<2x64xf32>
    %238 = vector.extract_strided_slice %5 {offsets = [12, 0], sizes = [2, 128], strides = [1, 1]} : vector<16x256xf32> to vector<2x128xf32>
    %239 = vector.extract_strided_slice %5 {offsets = [2, 128], sizes = [2, 128], strides = [1, 1]} : vector<16x256xf32> to vector<2x128xf32>
    %240 = tpu.concatenate %238, %239 in 1 : vector<2x128xf32>, vector<2x128xf32> -> vector<2x256xf32>
    %cst_28 = arith.constant dense<0.000000e+00> : vector<2x256xf32>
    %241 = tpu.matmul %237, %6, %cst_28 {dimension_numbers = #tpu.dot_dimension_numbers<[1], [0], [0], [1], [0, 0, 1, 1], [], []>} : vector<2x64xf32>, vector<64x256xf32>, vector<2x256xf32> -> vector<2x256xf32>
    %242 = arith.addf %240, %241 : vector<2x256xf32>
    %243 = vector.extract_strided_slice %242 {offsets = [0, 0], sizes = [2, 128], strides = [1, 1]} : vector<2x256xf32> to vector<2x128xf32>
    %244 = arith.negf %243 : vector<2x128xf32>
    %245 = math.exp %244 : vector<2x128xf32>
    %cst_29 = arith.constant 1.000000e+00 : f32
    %246 = vector.broadcast %cst_29 : f32 to vector<2x128xf32>
    %247 = arith.addf %246, %245 : vector<2x128xf32>
    %248 = arith.divf %246, %247 : vector<2x128xf32>
    %249 = math.tanh %243 : vector<2x128xf32>
    %250 = vector.extract_strided_slice %248 {offsets = [0, 0], sizes = [2, 32], strides = [1, 1]} : vector<2x128xf32> to vector<2x32xf32>
    %251 = vector.extract_strided_slice %248 {offsets = [0, 32], sizes = [2, 32], strides = [1, 1]} : vector<2x128xf32> to vector<2x32xf32>
    %252 = vector.extract_strided_slice %249 {offsets = [0, 64], sizes = [2, 32], strides = [1, 1]} : vector<2x128xf32> to vector<2x32xf32>
    %253 = vector.extract_strided_slice %248 {offsets = [0, 96], sizes = [2, 32], strides = [1, 1]} : vector<2x128xf32> to vector<2x32xf32>
    %254 = arith.mulf %251, %218 : vector<2x32xf32>
    %255 = arith.mulf %250, %252 : vector<2x32xf32>
    %256 = arith.addf %254, %255 : vector<2x32xf32>
    %257 = math.tanh %256 : vector<2x32xf32>
    %258 = arith.mulf %253, %257 : vector<2x32xf32>
    %259 = vector.extract_strided_slice %242 {offsets = [0, 128], sizes = [2, 128], strides = [1, 1]} : vector<2x256xf32> to vector<2x128xf32>
    %260 = arith.negf %259 : vector<2x128xf32>
    %261 = math.exp %260 : vector<2x128xf32>
    %cst_30 = arith.constant 1.000000e+00 : f32
    %262 = vector.broadcast %cst_30 : f32 to vector<2x128xf32>
    %263 = arith.addf %262, %261 : vector<2x128xf32>
    %264 = arith.divf %262, %263 : vector<2x128xf32>
    %265 = math.tanh %259 : vector<2x128xf32>
    %266 = vector.extract_strided_slice %264 {offsets = [0, 0], sizes = [2, 32], strides = [1, 1]} : vector<2x128xf32> to vector<2x32xf32>
    %267 = vector.extract_strided_slice %264 {offsets = [0, 32], sizes = [2, 32], strides = [1, 1]} : vector<2x128xf32> to vector<2x32xf32>
    %268 = vector.extract_strided_slice %265 {offsets = [0, 64], sizes = [2, 32], strides = [1, 1]} : vector<2x128xf32> to vector<2x32xf32>
    %269 = vector.extract_strided_slice %264 {offsets = [0, 96], sizes = [2, 32], strides = [1, 1]} : vector<2x128xf32> to vector<2x32xf32>
    %270 = arith.mulf %267, %234 : vector<2x32xf32>
    %271 = arith.mulf %266, %268 : vector<2x32xf32>
    %272 = arith.addf %270, %271 : vector<2x32xf32>
    %273 = math.tanh %272 : vector<2x32xf32>
    %274 = arith.mulf %269, %273 : vector<2x32xf32>
    %275 = tpu.concatenate %258, %274 in 1 : vector<2x32xf32>, vector<2x32xf32> -> vector<2x64xf32>
    %276 = vector.extract_strided_slice %5 {offsets = [14, 0], sizes = [2, 128], strides = [1, 1]} : vector<16x256xf32> to vector<2x128xf32>
    %277 = vector.extract_strided_slice %5 {offsets = [0, 128], sizes = [2, 128], strides = [1, 1]} : vector<16x256xf32> to vector<2x128xf32>
    %278 = tpu.concatenate %276, %277 in 1 : vector<2x128xf32>, vector<2x128xf32> -> vector<2x256xf32>
    %cst_31 = arith.constant dense<0.000000e+00> : vector<2x256xf32>
    %279 = tpu.matmul %275, %6, %cst_31 {dimension_numbers = #tpu.dot_dimension_numbers<[1], [0], [0], [1], [0, 0, 1, 1], [], []>} : vector<2x64xf32>, vector<64x256xf32>, vector<2x256xf32> -> vector<2x256xf32>
    %280 = arith.addf %278, %279 : vector<2x256xf32>
    %281 = vector.extract_strided_slice %280 {offsets = [0, 0], sizes = [2, 128], strides = [1, 1]} : vector<2x256xf32> to vector<2x128xf32>
    %282 = arith.negf %281 : vector<2x128xf32>
    %283 = math.exp %282 : vector<2x128xf32>
    %cst_32 = arith.constant 1.000000e+00 : f32
    %284 = vector.broadcast %cst_32 : f32 to vector<2x128xf32>
    %285 = arith.addf %284, %283 : vector<2x128xf32>
    %286 = arith.divf %284, %285 : vector<2x128xf32>
    %287 = math.tanh %281 : vector<2x128xf32>
    %288 = vector.extract_strided_slice %286 {offsets = [0, 0], sizes = [2, 32], strides = [1, 1]} : vector<2x128xf32> to vector<2x32xf32>
    %289 = vector.extract_strided_slice %286 {offsets = [0, 32], sizes = [2, 32], strides = [1, 1]} : vector<2x128xf32> to vector<2x32xf32>
    %290 = vector.extract_strided_slice %287 {offsets = [0, 64], sizes = [2, 32], strides = [1, 1]} : vector<2x128xf32> to vector<2x32xf32>
    %291 = vector.extract_strided_slice %286 {offsets = [0, 96], sizes = [2, 32], strides = [1, 1]} : vector<2x128xf32> to vector<2x32xf32>
    %292 = arith.mulf %289, %256 : vector<2x32xf32>
    %293 = arith.mulf %288, %290 : vector<2x32xf32>
    %294 = arith.addf %292, %293 : vector<2x32xf32>
    %295 = math.tanh %294 : vector<2x32xf32>
    %296 = arith.mulf %291, %295 : vector<2x32xf32>
    %297 = vector.extract_strided_slice %280 {offsets = [0, 128], sizes = [2, 128], strides = [1, 1]} : vector<2x256xf32> to vector<2x128xf32>
    %298 = arith.negf %297 : vector<2x128xf32>
    %299 = math.exp %298 : vector<2x128xf32>
    %cst_33 = arith.constant 1.000000e+00 : f32
    %300 = vector.broadcast %cst_33 : f32 to vector<2x128xf32>
    %301 = arith.addf %300, %299 : vector<2x128xf32>
    %302 = arith.divf %300, %301 : vector<2x128xf32>
    %303 = math.tanh %297 : vector<2x128xf32>
    %304 = vector.extract_strided_slice %302 {offsets = [0, 0], sizes = [2, 32], strides = [1, 1]} : vector<2x128xf32> to vector<2x32xf32>
    %305 = vector.extract_strided_slice %302 {offsets = [0, 32], sizes = [2, 32], strides = [1, 1]} : vector<2x128xf32> to vector<2x32xf32>
    %306 = vector.extract_strided_slice %303 {offsets = [0, 64], sizes = [2, 32], strides = [1, 1]} : vector<2x128xf32> to vector<2x32xf32>
    %307 = vector.extract_strided_slice %302 {offsets = [0, 96], sizes = [2, 32], strides = [1, 1]} : vector<2x128xf32> to vector<2x32xf32>
    %308 = arith.mulf %305, %272 : vector<2x32xf32>
    %309 = arith.mulf %304, %306 : vector<2x32xf32>
    %310 = arith.addf %308, %309 : vector<2x32xf32>
    %311 = math.tanh %310 : vector<2x32xf32>
    %312 = arith.mulf %307, %311 : vector<2x32xf32>
    %313 = tpu.concatenate %30, %68, %106, %144, %182, %220, %258, %296 in 0 : vector<2x32xf32>, vector<2x32xf32>, vector<2x32xf32>, vector<2x32xf32>, vector<2x32xf32>, vector<2x32xf32>, vector<2x32xf32>, vector<2x32xf32> -> vector<16x32xf32>
    %314 = tpu.concatenate %312, %274, %236, %198, %160, %122, %84, %46 in 0 : vector<2x32xf32>, vector<2x32xf32>, vector<2x32xf32>, vector<2x32xf32>, vector<2x32xf32>, vector<2x32xf32>, vector<2x32xf32>, vector<2x32xf32> -> vector<16x32xf32>
    %315 = tpu.concatenate %313, %314 in 1 : vector<16x32xf32>, vector<16x32xf32> -> vector<16x64xf32>
    %c0_34 = arith.constant 0 : index
    %c0_35 = arith.constant 0 : index
    %316 = vector.load %arg4[%c0_34, %c0_35] : memref<64x16xf32, #tpu.memory_space<vmem>>, vector<64x16xf32>
    %cst_36 = arith.constant dense<0.000000e+00> : vector<16x16xf32>
    %317 = tpu.matmul %315, %316, %cst_36 {dimension_numbers = #tpu.dot_dimension_numbers<[1], [0], [0], [1], [0, 0, 1, 1], [], []>} : vector<16x64xf32>, vector<64x16xf32>, vector<16x16xf32> -> vector<16x16xf32>
    %c0_37 = arith.constant 0 : index
    %c0_38 = arith.constant 0 : index
    %318 = vector.load %arg5[%c0_37, %c0_38] : memref<1x16xf32, #tpu.memory_space<vmem>>, vector<1x16xf32>
    %319 = vector.broadcast %318 : vector<1x16xf32> to vector<16x16xf32>
    %320 = arith.addf %317, %319 : vector<16x16xf32>
    %c0_39 = arith.constant 0 : index
    %c0_40 = arith.constant 0 : index
    %321 = vector.load %arg6[%c0_39, %c0_40] : memref<16x16xf32, #tpu.memory_space<vmem>>, vector<16x16xf32>
    tpu.vector_store %arg6[%c0_39, %c0_40], %320 {strides = array<i32>} : memref<16x16xf32, #tpu.memory_space<vmem>>, vector<16x16xf32>,
    return
  }
}

</mosaic_0001>

<llo_original>
// kernel: bidirectional_lstm_forward.1
$region0: #{bidirectional_lstm_forward.1}
  #allocation0 [shape = 'u32[]', space=smem, size = 0x4, offset = 0x4, fixed_abs, tag = 'smem constant byte address 0x4 - core index']
  #allocation1 [shape = 'u32[144,128]{1,0:T(1,128)}', space=vmem, size = 0x12000, scoped, tag = 'internal scratch']
  %s0 = inlined_call_operand.vmem [shape: f32[16,32], index: 0, kind: input, shape index: {}]
  %s1 = inlined_call_operand.vmem [shape: f32[32,256], index: 1, kind: input, shape index: {}]
  %s2 = inlined_call_operand.vmem [shape: f32[1,256], index: 2, kind: input, shape index: {}]
  %s3 = inlined_call_operand.hbm [shape: f32[64,256], index: 3, kind: input, shape index: {}]
  %s4 = inlined_call_operand.vmem [shape: f32[64,16], index: 4, kind: input, shape index: {}]
  %s5 = inlined_call_operand.vmem [shape: f32[1,16], index: 5, kind: input, shape index: {}]
  %s6 = inlined_call_operand.hbm [shape: f32[16,16], index: 6, kind: output, shape index: {}]
  %s7 = sld [smem:[#allocation0]]
  $region38: #{bidirectional_lstm_forward.1} parent=0
    _
  %s9 = ssub.s32 1, %s7
  %s10 = scalar_select 0, %s9, %s7
  $region1: #{bidirectional_lstm_forward.1} parent=0
    #allocation2 [shape = 'u8[65536]{0}', space=vmem, size = 0x10000, scoped, tag = 'input window, operand 3, single buffered']
    #allocation3 [shape = 's32[1]{0}', space=sflag, size = 0x4, scoped, tag = 'scoped memory for bidirectional_lstm_forward.1']
    #allocation4 [shape = 's32[1]{0}', space=sflag, size = 0x4, scoped, tag = 'scoped memory for bidirectional_lstm_forward.1']
    #allocation5 [shape = 'u8[8192]{0}', space=vmem, size = 0x2000, scoped, tag = 'output window, operand 0, single buffered']
    %11 = vsyncpa [#allocation3], 0
    %12 = vsyncpa [#allocation4], 0
    // Predicated region
    $region2: #{bidirectional_lstm_forward.1} parent=1 // pred_check
      _
    $region3: #{bidirectional_lstm_forward.1} parent=1 // pred_check_branch
      %14 = sbr.rel (0) target = $region5
    $region4: #{bidirectional_lstm_forward.1} parent=1 // pred_region
      _
    $region5: #{bidirectional_lstm_forward.1} parent=1 // pred_fallthru
      _
    // Predicated region
    $region6: #{bidirectional_lstm_forward.1} parent=1 // pred_check
      _
    $region7: #{bidirectional_lstm_forward.1} parent=1 // pred_check_branch
      %16 = sbr.rel (0) target = $region9
    $region8: #{bidirectional_lstm_forward.1} parent=1 // pred_region
      _
    $region9: #{bidirectional_lstm_forward.1} parent=1 // pred_fallthru
      _
    // Predicated region
    $region10: #{bidirectional_lstm_forward.1} parent=1 // pred_check
      _
    $region11: #{bidirectional_lstm_forward.1} parent=1 // pred_check_branch
      %18 = sbr.rel (0) target = $region13
    $region12: #{bidirectional_lstm_forward.1} parent=1 // pred_region
      _
    $region13: #{bidirectional_lstm_forward.1} parent=1 // pred_fallthru
      _
    // Predicated region
    $region14: #{bidirectional_lstm_forward.1} parent=1 // pred_check
      _
    $region15: #{bidirectional_lstm_forward.1} parent=1 // pred_check_branch
      %20 = sbr.rel (0) target = $region17
    $region16: #{bidirectional_lstm_forward.1} parent=1 // pred_region
      %s22 = ssub.s32 2048, 2048
      %23 = vsyncadd [#allocation3], %s22
      %s24 = sshll.u32 [#allocation2], 4
      %s25 = int_to_ptr.vmem [resolvable:$true] %s24
      %30 = dma.hbm_to_vmem [thread:$0]  %s3, 2048, %s25, [#allocation3], 256, 256, 16
    $region17: #{bidirectional_lstm_forward.1} parent=1 // pred_fallthru
      _
    // Predicated region
    $region18: #{bidirectional_lstm_forward.1} parent=1 // pred_check
      _
    $region19: #{bidirectional_lstm_forward.1} parent=1 // pred_check_branch
      %32 = sbr.rel (0) target = $region21
    $region20: #{bidirectional_lstm_forward.1} parent=1 // pred_region
      _
    $region21: #{bidirectional_lstm_forward.1} parent=1 // pred_fallthru
      _
    // Predicated region
    $region22: #{bidirectional_lstm_forward.1} parent=1 // pred_check
      _
    $region23: #{bidirectional_lstm_forward.1} parent=1 // pred_check_branch
      %34 = sbr.rel (0) target = $region25
    $region24: #{bidirectional_lstm_forward.1} parent=1 // pred_region
      _
    $region25: #{bidirectional_lstm_forward.1} parent=1 // pred_fallthru
      _
    // Predicated region
    $region26: #{bidirectional_lstm_forward.1} parent=1 // pred_check
      _
    $region27: #{bidirectional_lstm_forward.1} parent=1 // pred_check_branch
      %36 = sbr.rel (0) target = $region29
    $region28: #{bidirectional_lstm_forward.1} parent=1 // pred_region
      %37 = dma.done [#allocation3], 2048
    $region29: #{bidirectional_lstm_forward.1} parent=1 // pred_fallthru
      _
    %v38 = vld [vmem:[%s0] sm:$0xff]
    %v39 = vld [vmem:[%s0 + $0x8] sm:$0xff]
    %v40 = vld [vmem:[%s1] sm:$0xff]
    %v41 = vld [vmem:[%s1 + $0x8] sm:$0xff]
    %v42 = vld [vmem:[%s1 + $0x10] sm:$0xff]
    %v43 = vld [vmem:[%s1 + $0x18] sm:$0xff]
    %v44 = vld [vmem:[%s1 + $0x20] sm:$0xff]
    %v45 = vld [vmem:[%s1 + $0x28] sm:$0xff]
    %v46 = vld [vmem:[%s1 + $0x30] sm:$0xff]
    %v47 = vld [vmem:[%s1 + $0x38] sm:$0xff]
    %v48 = vld [vmem:[%s2] sm:$0x3]
    %v50 = vlaneseq
    %v51 = vshrl.u32 %v50, 7
    %v52 = vsub.s32 0, %v51
    %v53 = vrot.slane %v48, %v52
    %v54 = vlaneseq
    %v55 = vshrl.u32 %v54, 7
    %v56 = vsub.s32 1, %v55
    %v57 = vrot.slane %v48, %v56
    %vm60 = vcmask 261120
    %v62 = vsel %vm60, %v38, 0
    %v65 = vsel %vm60, %v39, 0
    %67 = vmatprep.subr.mxu0 %v41
    %68 = vmatpush1.msra.mxu0 %v40
    %69 = vmatprep.subr.mxu0 %v43
    %70 = vmatpush1.msra.mxu0 %v42
    %71 = vmatprep.subr.mxu0 %v45
    %72 = vmatpush1.msra.mxu0 %v44
    %73 = vmatprep.subr.mxu0 %v47
    %74 = vmatpush1.msra.mxu0 %v46
    %75 = vmatprep.subr.mxu0 0.0
    %76 = vmatpush1.msra.mxu0 0.0
    %77 = vmatprep.subr.mxu0 0.0
    %78 = vmatpush1.msra.mxu0 0.0
    %79 = vmatprep.subr.mxu0 0.0
    %80 = vmatpush1.msra.mxu0 0.0
    %81 = vmatprep.subr.mxu0 0.0
    %82 = vmatpush1.msra.mxu0 0.0
    %83 = vmatprep.subr.mxu0 0.0
    %84 = vmatpush1.msra.mxu0 0.0
    %85 = vmatprep.subr.mxu0 0.0
    %86 = vmatpush1.msra.mxu0 0.0
    %87 = vmatprep.subr.mxu0 0.0
    %88 = vmatpush1.msra.mxu0 0.0
    %89 = vmatprep.subr.mxu0 0.0
    %90 = vmatpush1.msra.mxu0 0.0
    %91 = vmatprep.subr.mxu0 0.0
    %92 = vmatpush1.msra.mxu0 0.0
    %93 = vmatprep.subr.mxu0 0.0
    %94 = vmatpush1.msra.mxu0 0.0
    %95 = vmatprep.subr.mxu0 0.0
    %96 = vmatpush1.msra.mxu0 0.0
    %97 = vmatprep.subr.mxu0 0.0
    %98 = vmatpush1.msra.mxu0 0.0
    %99 = vmatprep.subr.mxu0 0.0
    %100 = vmatpush1.msra.mxu0 0.0
    %101 = vmatprep.subr.mxu0 0.0
    %102 = vmatpush1.msra.mxu0 0.0
    %103 = vmatprep.subr.mxu0 0.0
    %104 = vmatpush1.msra.mxu0 0.0
    %105 = vmatprep.subr.mxu0 0.0
    %106 = vmatpush1.msra.mxu0 0.0
    %107 = vmatprep.subr.mxu0 0.0
    %108 = vmatpush1.msra.mxu0 0.0
    %109 = vmatprep.subr.mxu0 0.0
    %110 = vmatpush1.msra.mxu0 0.0
    %111 = vmatprep.subr.mxu0 0.0
    %112 = vmatpush1.msra.mxu0 0.0
    %113 = vmatprep.subr.mxu0 0.0
    %114 = vmatpush1.msra.mxu0 0.0
    %115 = vmatprep.subr.mxu0 0.0
    %116 = vmatpush1.msra.mxu0 0.0
    %117 = vmatprep.subr.mxu0 0.0
    %118 = vmatpush1.msra.mxu0 0.0
    %119 = vmatprep.subr.mxu0 0.0
    %120 = vmatpush1.msra.mxu0 0.0
    %121 = vmatprep.subr.mxu0 0.0
    %122 = vmatpush1.msra.mxu0 0.0
    %123 = vmatprep.subr.mxu0 0.0
    %124 = vmatpush1.msra.mxu0 0.0
    %125 = vmatprep.subr.mxu0 0.0
    %126 = vmatpush1.msra.mxu0 0.0
    %127 = vmatprep.subr.mxu0 0.0
    %128 = vmatpush1.msra.mxu0 0.0
    %129 = vmatprep.subr.mxu0 0.0
    %130 = vmatpush1.msra.mxu0 0.0
    %131 = vmatprep.mubr.f32.mxu0 0.0
    %132 = vmatmul.mubr.f32.gmra.mrb[0].mxu0 %v62
    %v133 = vpop.f32.mrb[0].mxu0
    %v134 = vadd.f32 %v53, %v133
    %v135 = vpop.f32.mrb[0].mxu0
    %v136 = vadd.f32 %v57, %v135
    %137 = vmatprep.mubr.f32.mxu0 0.0
    %138 = vmatmul.mubr.f32.gmra.mrb[0].mxu0 %v65
    %v139 = vpop.f32.mrb[0].mxu0
    %v140 = vadd.f32 %v53, %v139
    %v141 = vpop.f32.mrb[0].mxu0
    %v142 = vadd.f32 %v57, %v141
    %143 = vdwg.mxu0
    %v144 = vld [vmem:[#allocation2] sm:$0xff]
    %v145 = vld [vmem:[#allocation2 + $0x8] sm:$0xff]
    %v146 = vld [vmem:[#allocation2 + $0x10] sm:$0xff]
    %v147 = vld [vmem:[#allocation2 + $0x18] sm:$0xff]
    %v148 = vld [vmem:[#allocation2 + $0x20] sm:$0xff]
    %v149 = vld [vmem:[#allocation2 + $0x28] sm:$0xff]
    %v150 = vld [vmem:[#allocation2 + $0x30] sm:$0xff]
    %v151 = vld [vmem:[#allocation2 + $0x38] sm:$0xff]
    %v152 = vld [vmem:[#allocation2 + $0x40] sm:$0xff]
    %v153 = vld [vmem:[#allocation2 + $0x48] sm:$0xff]
    %v154 = vld [vmem:[#allocation2 + $0x50] sm:$0xff]
    %v155 = vld [vmem:[#allocation2 + $0x58] sm:$0xff]
    %v156 = vld [vmem:[#allocation2 + $0x60] sm:$0xff]
    %v157 = vld [vmem:[#allocation2 + $0x68] sm:$0xff]
    %v158 = vld [vmem:[#allocation2 + $0x70] sm:$0xff]
    %v159 = vld [vmem:[#allocation2 + $0x78] sm:$0xff]
    %v161 = vrot.slane %v142, 6
    %vm163 = vcmask 523264
    %v165 = vsel %vm163, 0.0, 0
    %167 = vmatprep.subr.mxu0 %v145
    %168 = vmatpush1.msra.mxu0 %v144
    %169 = vmatprep.subr.mxu0 %v147
    %170 = vmatpush1.msra.mxu0 %v146
    %171 = vmatprep.subr.mxu0 %v149
    %172 = vmatpush1.msra.mxu0 %v148
    %173 = vmatprep.subr.mxu0 %v151
    %174 = vmatpush1.msra.mxu0 %v150
    %175 = vmatprep.subr.mxu0 %v153
    %176 = vmatpush1.msra.mxu0 %v152
    %177 = vmatprep.subr.mxu0 %v155
    %178 = vmatpush1.msra.mxu0 %v154
    %179 = vmatprep.subr.mxu0 %v157
    %180 = vmatpush1.msra.mxu0 %v156
    %181 = vmatprep.subr.mxu0 %v159
    %182 = vmatpush1.msra.mxu0 %v158
    %183 = vmatprep.subr.mxu0 0.0
    %184 = vmatpush1.msra.mxu0 0.0
    %185 = vmatprep.subr.mxu0 0.0
    %186 = vmatpush1.msra.mxu0 0.0
    %187 = vmatprep.subr.mxu0 0.0
    %188 = vmatpush1.msra.mxu0 0.0
    %189 = vmatprep.subr.mxu0 0.0
    %190 = vmatpush1.msra.mxu0 0.0
    %191 = vmatprep.subr.mxu0 0.0
    %192 = vmatpush1.msra.mxu0 0.0
    %193 = vmatprep.subr.mxu0 0.0
    %194 = vmatpush1.msra.mxu0 0.0
    %195 = vmatprep.subr.mxu0 0.0
    %196 = vmatpush1.msra.mxu0 0.0
    %197 = vmatprep.subr.mxu0 0.0
    %198 = vmatpush1.msra.mxu0 0.0
    %199 = vmatprep.subr.mxu0 0.0
    %200 = vmatpush1.msra.mxu0 0.0
    %201 = vmatprep.subr.mxu0 0.0
    %202 = vmatpush1.msra.mxu0 0.0
    %203 = vmatprep.subr.mxu0 0.0
    %204 = vmatpush1.msra.mxu0 0.0
    %205 = vmatprep.subr.mxu0 0.0
    %206 = vmatpush1.msra.mxu0 0.0
    %207 = vmatprep.subr.mxu0 0.0
    %208 = vmatpush1.msra.mxu0 0.0
    %209 = vmatprep.subr.mxu0 0.0
    %210 = vmatpush1.msra.mxu0 0.0
    %211 = vmatprep.subr.mxu0 0.0
    %212 = vmatpush1.msra.mxu0 0.0
    %213 = vmatprep.subr.mxu0 0.0
    %214 = vmatpush1.msra.mxu0 0.0
    %215 = vmatprep.subr.mxu0 0.0
    %216 = vmatpush1.msra.mxu0 0.0
    %217 = vmatprep.subr.mxu0 0.0
    %218 = vmatpush1.msra.mxu0 0.0
    %219 = vmatprep.subr.mxu0 0.0
    %220 = vmatpush1.msra.mxu0 0.0
    %221 = vmatprep.subr.mxu0 0.0
    %222 = vmatpush1.msra.mxu0 0.0
    %223 = vmatprep.subr.mxu0 0.0
    %224 = vmatpush1.msra.mxu0 0.0
    %225 = vmatprep.subr.mxu0 0.0
    %226 = vmatpush1.msra.mxu0 0.0
    %227 = vmatprep.subr.mxu0 0.0
    %228 = vmatpush1.msra.mxu0 0.0
    %229 = vmatprep.subr.mxu0 0.0
    %230 = vmatpush1.msra.mxu0 0.0
    %231 = vmatprep.mubr.f32.mxu0 0.0
    %232 = vmatmul.mubr.f32.gmra.mrb[0].mxu0 %v165
    %v233 = vpop.f32.mrb[0].mxu0
    %v234 = vadd.f32 0.0, %v233
    %v235 = vpop.f32.mrb[0].mxu0
    %v236 = vadd.f32 0.0, %v235
    %237 = vdwg.mxu0
    %v238 = vadd.f32 %v134, %v234
    %v239 = vadd.f32 %v161, %v236
    %v240 = vxor.u32 %v238, 2147483648
    %v241 = vmul.f32 %v240, 1.442695
    %v242 = vpow.pop %v241
    %v243 = vadd.f32 %v242, 1.0
    %v244 = vrcp.pop %v243
    %v245 = vmul.f32 1.0, %v244
    %v246 = vtanh.pop %v238
    %v247 = vmul.f32 %v245, 0.0
    %249 = vrot.lane.b32.xlu0 %v246, 64
    %v250 = vpop.permute.xlu0 %249
    %v252 = vmul.f32 %v245, %v250
    %254 = vrot.lane.b32.xlu0 %v252, 32
    %v255 = vpop.permute.xlu0 %254
    %v257 = vadd.f32 %v247, %v255
    %v258 = vtanh.pop %v257
    %260 = vrot.lane.b32.xlu0 %v258, 64
    %v261 = vpop.permute.xlu0 %260
    %v263 = vmul.f32 %v245, %v261
    %v264 = vxor.u32 %v239, 2147483648
    %v265 = vmul.f32 %v264, 1.442695
    %v266 = vpow.pop %v265
    %v267 = vadd.f32 %v266, 1.0
    %v268 = vrcp.pop %v267
    %v269 = vmul.f32 1.0, %v268
    %v270 = vtanh.pop %v239
    %v271 = vmul.f32 %v269, 0.0
    %273 = vrot.lane.b32.xlu0 %v270, 64
    %v274 = vpop.permute.xlu0 %273
    %v276 = vmul.f32 %v269, %v274
    %278 = vrot.lane.b32.xlu0 %v276, 32
    %v279 = vpop.permute.xlu0 %278
    %v281 = vadd.f32 %v271, %v279
    %v282 = vtanh.pop %v281
    %284 = vrot.lane.b32.xlu0 %v282, 64
    %v285 = vpop.permute.xlu0 %284
    %v287 = vmul.f32 %v269, %v285
    %289 = vrot.lane.b32.xlu0 %v263, 32
    %v290 = vpop.permute.xlu0 %289
    %293 = vrot.lane.b32.xlu0 %v287, 64
    %v294 = vpop.permute.xlu0 %293
    %v296 = vsel %vm60, %v290, %v294
    %v297 = vrot.slane %v142, 2
    %v300 = vsel %vm163, %v296, 0
    %302 = vmatprep.subr.mxu0 %v145
    %303 = vmatpush1.msra.mxu0 %v144
    %304 = vmatprep.subr.mxu0 %v147
    %305 = vmatpush1.msra.mxu0 %v146
    %306 = vmatprep.subr.mxu0 %v149
    %307 = vmatpush1.msra.mxu0 %v148
    %308 = vmatprep.subr.mxu0 %v151
    %309 = vmatpush1.msra.mxu0 %v150
    %310 = vmatprep.subr.mxu0 %v153
    %311 = vmatpush1.msra.mxu0 %v152
    %312 = vmatprep.subr.mxu0 %v155
    %313 = vmatpush1.msra.mxu0 %v154
    %314 = vmatprep.subr.mxu0 %v157
    %315 = vmatpush1.msra.mxu0 %v156
    %316 = vmatprep.subr.mxu0 %v159
    %317 = vmatpush1.msra.mxu0 %v158
    %318 = vmatprep.subr.mxu0 0.0
    %319 = vmatpush1.msra.mxu0 0.0
    %320 = vmatprep.subr.mxu0 0.0
    %321 = vmatpush1.msra.mxu0 0.0
    %322 = vmatprep.subr.mxu0 0.0
    %323 = vmatpush1.msra.mxu0 0.0
    %324 = vmatprep.subr.mxu0 0.0
    %325 = vmatpush1.msra.mxu0 0.0
    %326 = vmatprep.subr.mxu0 0.0
    %327 = vmatpush1.msra.mxu0 0.0
    %328 = vmatprep.subr.mxu0 0.0
    %329 = vmatpush1.msra.mxu0 0.0
    %330 = vmatprep.subr.mxu0 0.0
    %331 = vmatpush1.msra.mxu0 0.0
    %332 = vmatprep.subr.mxu0 0.0
    %333 = vmatpush1.msra.mxu0 0.0
    %334 = vmatprep.subr.mxu0 0.0
    %335 = vmatpush1.msra.mxu0 0.0
    %336 = vmatprep.subr.mxu0 0.0
    %337 = vmatpush1.msra.mxu0 0.0
    %338 = vmatprep.subr.mxu0 0.0
    %339 = vmatpush1.msra.mxu0 0.0
    %340 = vmatprep.subr.mxu0 0.0
    %341 = vmatpush1.msra.mxu0 0.0
    %342 = vmatprep.subr.mxu0 0.0
    %343 = vmatpush1.msra.mxu0 0.0
    %344 = vmatprep.subr.mxu0 0.0
    %345 = vmatpush1.msra.mxu0 0.0
    %346 = vmatprep.subr.mxu0 0.0
    %347 = vmatpush1.msra.mxu0 0.0
    %348 = vmatprep.subr.mxu0 0.0
    %349 = vmatpush1.msra.mxu0 0.0
    %350 = vmatprep.subr.mxu0 0.0
    %351 = vmatpush1.msra.mxu0 0.0
    %352 = vmatprep.subr.mxu0 0.0
    %353 = vmatpush1.msra.mxu0 0.0
    %354 = vmatprep.subr.mxu0 0.0
    %355 = vmatpush1.msra.mxu0 0.0
    %356 = vmatprep.subr.mxu0 0.0
    %357 = vmatpush1.msra.mxu0 0.0
    %358 = vmatprep.subr.mxu0 0.0
    %359 = vmatpush1.msra.mxu0 0.0
    %360 = vmatprep.subr.mxu0 0.0
    %361 = vmatpush1.msra.mxu0 0.0
    %362 = vmatprep.subr.mxu0 0.0
    %363 = vmatpush1.msra.mxu0 0.0
    %364 = vmatprep.subr.mxu0 0.0
    %365 = vmatpush1.msra.mxu0 0.0
    %366 = vmatprep.mubr.f32.mxu0 0.0
    %367 = vmatmul.mubr.f32.gmra.mrb[0].mxu0 %v300
    %v368 = vpop.f32.mrb[0].mxu0
    %v369 = vadd.f32 0.0, %v368
    %v370 = vpop.f32.mrb[0].mxu0
    %v371 = vadd.f32 0.0, %v370
    %372 = vdwg.mxu0
    %v375 = vrot.slane %v369, 6
    %v376 = vrot.slane %v371, 6
    %v379 = vadd.f32 %v134, %v375
    %v380 = vadd.f32 %v297, %v376
    %v381 = vxor.u32 %v379, 2147483648
    %v382 = vmul.f32 %v381, 1.442695
    %v383 = vpow.pop %v382
    %v384 = vadd.f32 %v383, 1.0
    %v385 = vrcp.pop %v384
    %v386 = vmul.f32 1.0, %v385
    %v387 = vtanh.pop %v379
    %v389 = vrot.slane %v257, 6
    %v391 = vmul.f32 %v386, %v389
    %393 = vrot.lane.b32.xlu0 %v387, 64
    %v394 = vpop.permute.xlu0 %393
    %v396 = vmul.f32 %v386, %v394
    %398 = vrot.lane.b32.xlu0 %v396, 32
    %v399 = vpop.permute.xlu0 %398
    %v401 = vadd.f32 %v391, %v399
    %v402 = vtanh.pop %v401
    %404 = vrot.lane.b32.xlu0 %v402, 64
    %v405 = vpop.permute.xlu0 %404
    %v407 = vmul.f32 %v386, %v405
    %v408 = vxor.u32 %v380, 2147483648
    %v409 = vmul.f32 %v408, 1.442695
    %v410 = vpow.pop %v409
    %v411 = vadd.f32 %v410, 1.0
    %v412 = vrcp.pop %v411
    %v413 = vmul.f32 1.0, %v412
    %v414 = vtanh.pop %v380
    %v416 = vrot.slane %v281, 6
    %v418 = vmul.f32 %v413, %v416
    %420 = vrot.lane.b32.xlu0 %v414, 64
    %v421 = vpop.permute.xlu0 %420
    %v423 = vmul.f32 %v413, %v421
    %425 = vrot.lane.b32.xlu0 %v423, 32
    %v426 = vpop.permute.xlu0 %425
    %v428 = vadd.f32 %v418, %v426
    %v429 = vtanh.pop %v428
    %431 = vrot.lane.b32.xlu0 %v429, 64
    %v432 = vpop.permute.xlu0 %431
    %v434 = vmul.f32 %v413, %v432
    %436 = vrot.lane.b32.xlu0 %v407, 32
    %v437 = vpop.permute.xlu0 %436
    %440 = vrot.lane.b32.xlu0 %v434, 64
    %v441 = vpop.permute.xlu0 %440
    %v443 = vsel %vm60, %v437, %v441
    %v445 = vrot.slane %v443, 2
    %v446 = vsel %vm163, %v445, 0
    %448 = vmatprep.subr.mxu0 %v145
    %449 = vmatpush1.msra.mxu0 %v144
    %450 = vmatprep.subr.mxu0 %v147
    %451 = vmatpush1.msra.mxu0 %v146
    %452 = vmatprep.subr.mxu0 %v149
    %453 = vmatpush1.msra.mxu0 %v148
    %454 = vmatprep.subr.mxu0 %v151
    %455 = vmatpush1.msra.mxu0 %v150
    %456 = vmatprep.subr.mxu0 %v153
    %457 = vmatpush1.msra.mxu0 %v152
    %458 = vmatprep.subr.mxu0 %v155
    %459 = vmatpush1.msra.mxu0 %v154
    %460 = vmatprep.subr.mxu0 %v157
    %461 = vmatpush1.msra.mxu0 %v156
    %462 = vmatprep.subr.mxu0 %v159
    %463 = vmatpush1.msra.mxu0 %v158
    %464 = vmatprep.subr.mxu0 0.0
    %465 = vmatpush1.msra.mxu0 0.0
    %466 = vmatprep.subr.mxu0 0.0
    %467 = vmatpush1.msra.mxu0 0.0
    %468 = vmatprep.subr.mxu0 0.0
    %469 = vmatpush1.msra.mxu0 0.0
    %470 = vmatprep.subr.mxu0 0.0
    %471 = vmatpush1.msra.mxu0 0.0
    %472 = vmatprep.subr.mxu0 0.0
    %473 = vmatpush1.msra.mxu0 0.0
    %474 = vmatprep.subr.mxu0 0.0
    %475 = vmatpush1.msra.mxu0 0.0
    %476 = vmatprep.subr.mxu0 0.0
    %477 = vmatpush1.msra.mxu0 0.0
    %478 = vmatprep.subr.mxu0 0.0
    %479 = vmatpush1.msra.mxu0 0.0
    %480 = vmatprep.subr.mxu0 0.0
    %481 = vmatpush1.msra.mxu0 0.0
    %482 = vmatprep.subr.mxu0 0.0
    %483 = vmatpush1.msra.mxu0 0.0
    %484 = vmatprep.subr.mxu0 0.0
    %485 = vmatpush1.msra.mxu0 0.0
    %486 = vmatprep.subr.mxu0 0.0
    %487 = vmatpush1.msra.mxu0 0.0
    %488 = vmatprep.subr.mxu0 0.0
    %489 = vmatpush1.msra.mxu0 0.0
    %490 = vmatprep.subr.mxu0 0.0
    %491 = vmatpush1.msra.mxu0 0.0
    %492 = vmatprep.subr.mxu0 0.0
    %493 = vmatpush1.msra.mxu0 0.0
    %494 = vmatprep.subr.mxu0 0.0
    %495 = vmatpush1.msra.mxu0 0.0
    %496 = vmatprep.subr.mxu0 0.0
    %497 = vmatpush1.msra.mxu0 0.0
    %498 = vmatprep.subr.mxu0 0.0
    %499 = vmatpush1.msra.mxu0 0.0
    %500 = vmatprep.subr.mxu0 0.0
    %501 = vmatpush1.msra.mxu0 0.0
    %502 = vmatprep.subr.mxu0 0.0
    %503 = vmatpush1.msra.mxu0 0.0
    %504 = vmatprep.subr.mxu0 0.0
    %505 = vmatpush1.msra.mxu0 0.0
    %506 = vmatprep.subr.mxu0 0.0
    %507 = vmatpush1.msra.mxu0 0.0
    %508 = vmatprep.subr.mxu0 0.0
    %509 = vmatpush1.msra.mxu0 0.0
    %510 = vmatprep.subr.mxu0 0.0
    %511 = vmatpush1.msra.mxu0 0.0
    %512 = vmatprep.mubr.f32.mxu0 0.0
    %513 = vmatmul.mubr.f32.gmra.mrb[0].mxu0 %v446
    %v514 = vpop.f32.mrb[0].mxu0
    %v515 = vadd.f32 0.0, %v514
    %v516 = vpop.f32.mrb[0].mxu0
    %v517 = vadd.f32 0.0, %v516
    %518 = vdwg.mxu0
    %v521 = vrot.slane %v515, 4
    %v522 = vrot.slane %v517, 4
    %v525 = vadd.f32 %v134, %v521
    %v526 = vadd.f32 %v161, %v522
    %v527 = vxor.u32 %v525, 2147483648
    %v528 = vmul.f32 %v527, 1.442695
    %v529 = vpow.pop %v528
    %v530 = vadd.f32 %v529, 1.0
    %v531 = vrcp.pop %v530
    %v532 = vmul.f32 1.0, %v531
    %v533 = vtanh.pop %v525
    %v535 = vrot.slane %v401, 6
    %v537 = vmul.f32 %v532, %v535
    %539 = vrot.lane.b32.xlu0 %v533, 64
    %v540 = vpop.permute.xlu0 %539
    %v542 = vmul.f32 %v532, %v540
    %544 = vrot.lane.b32.xlu0 %v542, 32
    %v545 = vpop.permute.xlu0 %544
    %v547 = vadd.f32 %v537, %v545
    %v548 = vtanh.pop %v547
    %550 = vrot.lane.b32.xlu0 %v548, 64
    %v551 = vpop.permute.xlu0 %550
    %v553 = vmul.f32 %v532, %v551
    %v554 = vxor.u32 %v526, 2147483648
    %v555 = vmul.f32 %v554, 1.442695
    %v556 = vpow.pop %v555
    %v557 = vadd.f32 %v556, 1.0
    %v558 = vrcp.pop %v557
    %v559 = vmul.f32 1.0, %v558
    %v560 = vtanh.pop %v526
    %v562 = vrot.slane %v428, 6
    %v564 = vmul.f32 %v559, %v562
    %566 = vrot.lane.b32.xlu0 %v560, 64
    %v567 = vpop.permute.xlu0 %566
    %v569 = vmul.f32 %v559, %v567
    %571 = vrot.lane.b32.xlu0 %v569, 32
    %v572 = vpop.permute.xlu0 %571
    %v574 = vadd.f32 %v564, %v572
    %v575 = vtanh.pop %v574
    %577 = vrot.lane.b32.xlu0 %v575, 64
    %v578 = vpop.permute.xlu0 %577
    %v580 = vmul.f32 %v559, %v578
    %582 = vrot.lane.b32.xlu0 %v553, 32
    %v583 = vpop.permute.xlu0 %582
    %586 = vrot.lane.b32.xlu0 %v580, 64
    %v587 = vpop.permute.xlu0 %586
    %v589 = vsel %vm60, %v583, %v587
    %v591 = vrot.slane %v589, 4
    %v592 = vsel %vm163, %v591, 0
    %594 = vmatprep.subr.mxu0 %v145
    %595 = vmatpush1.msra.mxu0 %v144
    %596 = vmatprep.subr.mxu0 %v147
    %597 = vmatpush1.msra.mxu0 %v146
    %598 = vmatprep.subr.mxu0 %v149
    %599 = vmatpush1.msra.mxu0 %v148
    %600 = vmatprep.subr.mxu0 %v151
    %601 = vmatpush1.msra.mxu0 %v150
    %602 = vmatprep.subr.mxu0 %v153
    %603 = vmatpush1.msra.mxu0 %v152
    %604 = vmatprep.subr.mxu0 %v155
    %605 = vmatpush1.msra.mxu0 %v154
    %606 = vmatprep.subr.mxu0 %v157
    %607 = vmatpush1.msra.mxu0 %v156
    %608 = vmatprep.subr.mxu0 %v159
    %609 = vmatpush1.msra.mxu0 %v158
    %610 = vmatprep.subr.mxu0 0.0
    %611 = vmatpush1.msra.mxu0 0.0
    %612 = vmatprep.subr.mxu0 0.0
    %613 = vmatpush1.msra.mxu0 0.0
    %614 = vmatprep.subr.mxu0 0.0
    %615 = vmatpush1.msra.mxu0 0.0
    %616 = vmatprep.subr.mxu0 0.0
    %617 = vmatpush1.msra.mxu0 0.0
    %618 = vmatprep.subr.mxu0 0.0
    %619 = vmatpush1.msra.mxu0 0.0
    %620 = vmatprep.subr.mxu0 0.0
    %621 = vmatpush1.msra.mxu0 0.0
    %622 = vmatprep.subr.mxu0 0.0
    %623 = vmatpush1.msra.mxu0 0.0
    %624 = vmatprep.subr.mxu0 0.0
    %625 = vmatpush1.msra.mxu0 0.0
    %626 = vmatprep.subr.mxu0 0.0
    %627 = vmatpush1.msra.mxu0 0.0
    %628 = vmatprep.subr.mxu0 0.0
    %629 = vmatpush1.msra.mxu0 0.0
    %630 = vmatprep.subr.mxu0 0.0
    %631 = vmatpush1.msra.mxu0 0.0
    %632 = vmatprep.subr.mxu0 0.0
    %633 = vmatpush1.msra.mxu0 0.0
    %634 = vmatprep.subr.mxu0 0.0
    %635 = vmatpush1.msra.mxu0 0.0
    %636 = vmatprep.subr.mxu0 0.0
    %637 = vmatpush1.msra.mxu0 0.0
    %638 = vmatprep.subr.mxu0 0.0
    %639 = vmatpush1.msra.mxu0 0.0
    %640 = vmatprep.subr.mxu0 0.0
    %641 = vmatpush1.msra.mxu0 0.0
    %642 = vmatprep.subr.mxu0 0.0
    %643 = vmatpush1.msra.mxu0 0.0
    %644 = vmatprep.subr.mxu0 0.0
    %645 = vmatpush1.msra.mxu0 0.0
    %646 = vmatprep.subr.mxu0 0.0
    %647 = vmatpush1.msra.mxu0 0.0
    %648 = vmatprep.subr.mxu0 0.0
    %649 = vmatpush1.msra.mxu0 0.0
    %650 = vmatprep.subr.mxu0 0.0
    %651 = vmatpush1.msra.mxu0 0.0
    %652 = vmatprep.subr.mxu0 0.0
    %653 = vmatpush1.msra.mxu0 0.0
    %654 = vmatprep.subr.mxu0 0.0
    %655 = vmatpush1.msra.mxu0 0.0
    %656 = vmatprep.subr.mxu0 0.0
    %657 = vmatpush1.msra.mxu0 0.0
    %658 = vmatprep.mubr.f32.mxu0 0.0
    %659 = vmatmul.mubr.f32.gmra.mrb[0].mxu0 %v592
    %v660 = vpop.f32.mrb[0].mxu0
    %v661 = vadd.f32 0.0, %v660
    %v662 = vpop.f32.mrb[0].mxu0
    %v663 = vadd.f32 0.0, %v662
    %664 = vdwg.mxu0
    %v667 = vrot.slane %v661, 2
    %v668 = vrot.slane %v663, 2
    %v671 = vadd.f32 %v134, %v667
    %v672 = vadd.f32 %v297, %v668
    %v673 = vxor.u32 %v671, 2147483648
    %v674 = vmul.f32 %v673, 1.442695
    %v675 = vpow.pop %v674
    %v676 = vadd.f32 %v675, 1.0
    %v677 = vrcp.pop %v676
    %v678 = vmul.f32 1.0, %v677
    %v679 = vtanh.pop %v671
    %v681 = vrot.slane %v547, 6
    %v683 = vmul.f32 %v678, %v681
    %685 = vrot.lane.b32.xlu0 %v679, 64
    %v686 = vpop.permute.xlu0 %685
    %v688 = vmul.f32 %v678, %v686
    %690 = vrot.lane.b32.xlu0 %v688, 32
    %v691 = vpop.permute.xlu0 %690
    %v693 = vadd.f32 %v683, %v691
    %v694 = vtanh.pop %v693
    %696 = vrot.lane.b32.xlu0 %v694, 64
    %v697 = vpop.permute.xlu0 %696
    %v699 = vmul.f32 %v678, %v697
    %v700 = vxor.u32 %v672, 2147483648
    %v701 = vmul.f32 %v700, 1.442695
    %v702 = vpow.pop %v701
    %v703 = vadd.f32 %v702, 1.0
    %v704 = vrcp.pop %v703
    %v705 = vmul.f32 1.0, %v704
    %v706 = vtanh.pop %v672
    %v708 = vrot.slane %v574, 6
    %v710 = vmul.f32 %v705, %v708
    %712 = vrot.lane.b32.xlu0 %v706, 64
    %v713 = vpop.permute.xlu0 %712
    %v715 = vmul.f32 %v705, %v713
    %717 = vrot.lane.b32.xlu0 %v715, 32
    %v718 = vpop.permute.xlu0 %717
    %v720 = vadd.f32 %v710, %v718
    %v721 = vtanh.pop %v720
    %723 = vrot.lane.b32.xlu0 %v721, 64
    %v724 = vpop.permute.xlu0 %723
    %v726 = vmul.f32 %v705, %v724
    %728 = vrot.lane.b32.xlu0 %v699, 32
    %v729 = vpop.permute.xlu0 %728
    %732 = vrot.lane.b32.xlu0 %v726, 64
    %v733 = vpop.permute.xlu0 %732
    %v735 = vsel %vm60, %v729, %v733
    %v737 = vrot.slane %v136, 6
    %v740 = vrot.slane %v735, 6
    %v741 = vsel %vm163, %v740, 0
    %743 = vmatprep.subr.mxu0 %v145
    %744 = vmatpush1.msra.mxu0 %v144
    %745 = vmatprep.subr.mxu0 %v147
    %746 = vmatpush1.msra.mxu0 %v146
    %747 = vmatprep.subr.mxu0 %v149
    %748 = vmatpush1.msra.mxu0 %v148
    %749 = vmatprep.subr.mxu0 %v151
    %750 = vmatpush1.msra.mxu0 %v150
    %751 = vmatprep.subr.mxu0 %v153
    %752 = vmatpush1.msra.mxu0 %v152
    %753 = vmatprep.subr.mxu0 %v155
    %754 = vmatpush1.msra.mxu0 %v154
    %755 = vmatprep.subr.mxu0 %v157
    %756 = vmatpush1.msra.mxu0 %v156
    %757 = vmatprep.subr.mxu0 %v159
    %758 = vmatpush1.msra.mxu0 %v158
    %759 = vmatprep.subr.mxu0 0.0
    %760 = vmatpush1.msra.mxu0 0.0
    %761 = vmatprep.subr.mxu0 0.0
    %762 = vmatpush1.msra.mxu0 0.0
    %763 = vmatprep.subr.mxu0 0.0
    %764 = vmatpush1.msra.mxu0 0.0
    %765 = vmatprep.subr.mxu0 0.0
    %766 = vmatpush1.msra.mxu0 0.0
    %767 = vmatprep.subr.mxu0 0.0
    %768 = vmatpush1.msra.mxu0 0.0
    %769 = vmatprep.subr.mxu0 0.0
    %770 = vmatpush1.msra.mxu0 0.0
    %771 = vmatprep.subr.mxu0 0.0
    %772 = vmatpush1.msra.mxu0 0.0
    %773 = vmatprep.subr.mxu0 0.0
    %774 = vmatpush1.msra.mxu0 0.0
    %775 = vmatprep.subr.mxu0 0.0
    %776 = vmatpush1.msra.mxu0 0.0
    %777 = vmatprep.subr.mxu0 0.0
    %778 = vmatpush1.msra.mxu0 0.0
    %779 = vmatprep.subr.mxu0 0.0
    %780 = vmatpush1.msra.mxu0 0.0
    %781 = vmatprep.subr.mxu0 0.0
    %782 = vmatpush1.msra.mxu0 0.0
    %783 = vmatprep.subr.mxu0 0.0
    %784 = vmatpush1.msra.mxu0 0.0
    %785 = vmatprep.subr.mxu0 0.0
    %786 = vmatpush1.msra.mxu0 0.0
    %787 = vmatprep.subr.mxu0 0.0
    %788 = vmatpush1.msra.mxu0 0.0
    %789 = vmatprep.subr.mxu0 0.0
    %790 = vmatpush1.msra.mxu0 0.0
    %791 = vmatprep.subr.mxu0 0.0
    %792 = vmatpush1.msra.mxu0 0.0
    %793 = vmatprep.subr.mxu0 0.0
    %794 = vmatpush1.msra.mxu0 0.0
    %795 = vmatprep.subr.mxu0 0.0
    %796 = vmatpush1.msra.mxu0 0.0
    %797 = vmatprep.subr.mxu0 0.0
    %798 = vmatpush1.msra.mxu0 0.0
    %799 = vmatprep.subr.mxu0 0.0
    %800 = vmatpush1.msra.mxu0 0.0
    %801 = vmatprep.subr.mxu0 0.0
    %802 = vmatpush1.msra.mxu0 0.0
    %803 = vmatprep.subr.mxu0 0.0
    %804 = vmatpush1.msra.mxu0 0.0
    %805 = vmatprep.subr.mxu0 0.0
    %806 = vmatpush1.msra.mxu0 0.0
    %807 = vmatprep.mubr.f32.mxu0 0.0
    %808 = vmatmul.mubr.f32.gmra.mrb[0].mxu0 %v741
    %v809 = vpop.f32.mrb[0].mxu0
    %v810 = vadd.f32 0.0, %v809
    %v811 = vpop.f32.mrb[0].mxu0
    %v812 = vadd.f32 0.0, %v811
    %813 = vdwg.mxu0
    %v814 = vadd.f32 %v140, %v810
    %v815 = vadd.f32 %v737, %v812
    %v816 = vxor.u32 %v814, 2147483648
    %v817 = vmul.f32 %v816, 1.442695
    %v818 = vpow.pop %v817
    %v819 = vadd.f32 %v818, 1.0
    %v820 = vrcp.pop %v819
    %v821 = vmul.f32 1.0, %v820
    %v822 = vtanh.pop %v814
    %v824 = vrot.slane %v693, 6
    %v826 = vmul.f32 %v821, %v824
    %828 = vrot.lane.b32.xlu0 %v822, 64
    %v829 = vpop.permute.xlu0 %828
    %v831 = vmul.f32 %v821, %v829
    %833 = vrot.lane.b32.xlu0 %v831, 32
    %v834 = vpop.permute.xlu0 %833
    %v836 = vadd.f32 %v826, %v834
    %v837 = vtanh.pop %v836
    %839 = vrot.lane.b32.xlu0 %v837, 64
    %v840 = vpop.permute.xlu0 %839
    %v842 = vmul.f32 %v821, %v840
    %v843 = vxor.u32 %v815, 2147483648
    %v844 = vmul.f32 %v843, 1.442695
    %v845 = vpow.pop %v844
    %v846 = vadd.f32 %v845, 1.0
    %v847 = vrcp.pop %v846
    %v848 = vmul.f32 1.0, %v847
    %v849 = vtanh.pop %v815
    %v851 = vrot.slane %v720, 6
    %v853 = vmul.f32 %v848, %v851
    %855 = vrot.lane.b32.xlu0 %v849, 64
    %v856 = vpop.permute.xlu0 %855
    %v858 = vmul.f32 %v848, %v856
    %860 = vrot.lane.b32.xlu0 %v858, 32
    %v861 = vpop.permute.xlu0 %860
    %v863 = vadd.f32 %v853, %v861
    %v864 = vtanh.pop %v863
    %866 = vrot.lane.b32.xlu0 %v864, 64
    %v867 = vpop.permute.xlu0 %866
    %v869 = vmul.f32 %v848, %v867
    %871 = vrot.lane.b32.xlu0 %v842, 32
    %v872 = vpop.permute.xlu0 %871
    %875 = vrot.lane.b32.xlu0 %v869, 64
    %v876 = vpop.permute.xlu0 %875
    %v878 = vsel %vm60, %v872, %v876
    %v879 = vrot.slane %v136, 2
    %v882 = vsel %vm163, %v878, 0
    %884 = vmatprep.subr.mxu0 %v145
    %885 = vmatpush1.msra.mxu0 %v144
    %886 = vmatprep.subr.mxu0 %v147
    %887 = vmatpush1.msra.mxu0 %v146
    %888 = vmatprep.subr.mxu0 %v149
    %889 = vmatpush1.msra.mxu0 %v148
    %890 = vmatprep.subr.mxu0 %v151
    %891 = vmatpush1.msra.mxu0 %v150
    %892 = vmatprep.subr.mxu0 %v153
    %893 = vmatpush1.msra.mxu0 %v152
    %894 = vmatprep.subr.mxu0 %v155
    %895 = vmatpush1.msra.mxu0 %v154
    %896 = vmatprep.subr.mxu0 %v157
    %897 = vmatpush1.msra.mxu0 %v156
    %898 = vmatprep.subr.mxu0 %v159
    %899 = vmatpush1.msra.mxu0 %v158
    %900 = vmatprep.subr.mxu0 0.0
    %901 = vmatpush1.msra.mxu0 0.0
    %902 = vmatprep.subr.mxu0 0.0
    %903 = vmatpush1.msra.mxu0 0.0
    %904 = vmatprep.subr.mxu0 0.0
    %905 = vmatpush1.msra.mxu0 0.0
    %906 = vmatprep.subr.mxu0 0.0
    %907 = vmatpush1.msra.mxu0 0.0
    %908 = vmatprep.subr.mxu0 0.0
    %909 = vmatpush1.msra.mxu0 0.0
    %910 = vmatprep.subr.mxu0 0.0
    %911 = vmatpush1.msra.mxu0 0.0
    %912 = vmatprep.subr.mxu0 0.0
    %913 = vmatpush1.msra.mxu0 0.0
    %914 = vmatprep.subr.mxu0 0.0
    %915 = vmatpush1.msra.mxu0 0.0
    %916 = vmatprep.subr.mxu0 0.0
    %917 = vmatpush1.msra.mxu0 0.0
    %918 = vmatprep.subr.mxu0 0.0
    %919 = vmatpush1.msra.mxu0 0.0
    %920 = vmatprep.subr.mxu0 0.0
    %921 = vmatpush1.msra.mxu0 0.0
    %922 = vmatprep.subr.mxu0 0.0
    %923 = vmatpush1.msra.mxu0 0.0
    %924 = vmatprep.subr.mxu0 0.0
    %925 = vmatpush1.msra.mxu0 0.0
    %926 = vmatprep.subr.mxu0 0.0
    %927 = vmatpush1.msra.mxu0 0.0
    %928 = vmatprep.subr.mxu0 0.0
    %929 = vmatpush1.msra.mxu0 0.0
    %930 = vmatprep.subr.mxu0 0.0
    %931 = vmatpush1.msra.mxu0 0.0
    %932 = vmatprep.subr.mxu0 0.0
    %933 = vmatpush1.msra.mxu0 0.0
    %934 = vmatprep.subr.mxu0 0.0
    %935 = vmatpush1.msra.mxu0 0.0
    %936 = vmatprep.subr.mxu0 0.0
    %937 = vmatpush1.msra.mxu0 0.0
    %938 = vmatprep.subr.mxu0 0.0
    %939 = vmatpush1.msra.mxu0 0.0
    %940 = vmatprep.subr.mxu0 0.0
    %941 = vmatpush1.msra.mxu0 0.0
    %942 = vmatprep.subr.mxu0 0.0
    %943 = vmatpush1.msra.mxu0 0.0
    %944 = vmatprep.subr.mxu0 0.0
    %945 = vmatpush1.msra.mxu0 0.0
    %946 = vmatprep.subr.mxu0 0.0
    %947 = vmatpush1.msra.mxu0 0.0
    %948 = vmatprep.mubr.f32.mxu0 0.0
    %949 = vmatmul.mubr.f32.gmra.mrb[0].mxu0 %v882
    %v950 = vpop.f32.mrb[0].mxu0
    %v951 = vadd.f32 0.0, %v950
    %v952 = vpop.f32.mrb[0].mxu0
    %v953 = vadd.f32 0.0, %v952
    %954 = vdwg.mxu0
    %v957 = vrot.slane %v951, 6
    %v958 = vrot.slane %v953, 6
    %v961 = vadd.f32 %v140, %v957
    %v962 = vadd.f32 %v879, %v958
    %v963 = vxor.u32 %v961, 2147483648
    %v964 = vmul.f32 %v963, 1.442695
    %v965 = vpow.pop %v964
    %v966 = vadd.f32 %v965, 1.0
    %v967 = vrcp.pop %v966
    %v968 = vmul.f32 1.0, %v967
    %v969 = vtanh.pop %v961
    %v971 = vrot.slane %v836, 6
    %v973 = vmul.f32 %v968, %v971
    %975 = vrot.lane.b32.xlu0 %v969, 64
    %v976 = vpop.permute.xlu0 %975
    %v978 = vmul.f32 %v968, %v976
    %980 = vrot.lane.b32.xlu0 %v978, 32
    %v981 = vpop.permute.xlu0 %980
    %v983 = vadd.f32 %v973, %v981
    %v984 = vtanh.pop %v983
    %986 = vrot.lane.b32.xlu0 %v984, 64
    %v987 = vpop.permute.xlu0 %986
    %v989 = vmul.f32 %v968, %v987
    %v990 = vxor.u32 %v962, 2147483648
    %v991 = vmul.f32 %v990, 1.442695
    %v992 = vpow.pop %v991
    %v993 = vadd.f32 %v992, 1.0
    %v994 = vrcp.pop %v993
    %v995 = vmul.f32 1.0, %v994
    %v996 = vtanh.pop %v962
    %v998 = vrot.slane %v863, 6
    %v1000 = vmul.f32 %v995, %v998
    %1002 = vrot.lane.b32.xlu0 %v996, 64
    %v1003 = vpop.permute.xlu0 %1002
    %v1005 = vmul.f32 %v995, %v1003
    %1007 = vrot.lane.b32.xlu0 %v1005, 32
    %v1008 = vpop.permute.xlu0 %1007
    %v1010 = vadd.f32 %v1000, %v1008
    %v1011 = vtanh.pop %v1010
    %1013 = vrot.lane.b32.xlu0 %v1011, 64
    %v1014 = vpop.permute.xlu0 %1013
    %v1016 = vmul.f32 %v995, %v1014
    %1018 = vrot.lane.b32.xlu0 %v989, 32
    %v1019 = vpop.permute.xlu0 %1018
    %1022 = vrot.lane.b32.xlu0 %v1016, 64
    %v1023 = vpop.permute.xlu0 %1022
    %v1025 = vsel %vm60, %v1019, %v1023
    %v1027 = vrot.slane %v1025, 2
    %v1028 = vsel %vm163, %v1027, 0
    %1030 = vmatprep.subr.mxu0 %v145
    %1031 = vmatpush1.msra.mxu0 %v144
    %1032 = vmatprep.subr.mxu0 %v147
    %1033 = vmatpush1.msra.mxu0 %v146
    %1034 = vmatprep.subr.mxu0 %v149
    %1035 = vmatpush1.msra.mxu0 %v148
    %1036 = vmatprep.subr.mxu0 %v151
    %1037 = vmatpush1.msra.mxu0 %v150
    %1038 = vmatprep.subr.mxu0 %v153
    %1039 = vmatpush1.msra.mxu0 %v152
    %1040 = vmatprep.subr.mxu0 %v155
    %1041 = vmatpush1.msra.mxu0 %v154
    %1042 = vmatprep.subr.mxu0 %v157
    %1043 = vmatpush1.msra.mxu0 %v156
    %1044 = vmatprep.subr.mxu0 %v159
    %1045 = vmatpush1.msra.mxu0 %v158
    %1046 = vmatprep.subr.mxu0 0.0
    %1047 = vmatpush1.msra.mxu0 0.0
    %1048 = vmatprep.subr.mxu0 0.0
    %1049 = vmatpush1.msra.mxu0 0.0
    %1050 = vmatprep.subr.mxu0 0.0
    %1051 = vmatpush1.msra.mxu0 0.0
    %1052 = vmatprep.subr.mxu0 0.0
    %1053 = vmatpush1.msra.mxu0 0.0
    %1054 = vmatprep.subr.mxu0 0.0
    %1055 = vmatpush1.msra.mxu0 0.0
    %1056 = vmatprep.subr.mxu0 0.0
    %1057 = vmatpush1.msra.mxu0 0.0
    %1058 = vmatprep.subr.mxu0 0.0
    %1059 = vmatpush1.msra.mxu0 0.0
    %1060 = vmatprep.subr.mxu0 0.0
    %1061 = vmatpush1.msra.mxu0 0.0
    %1062 = vmatprep.subr.mxu0 0.0
    %1063 = vmatpush1.msra.mxu0 0.0
    %1064 = vmatprep.subr.mxu0 0.0
    %1065 = vmatpush1.msra.mxu0 0.0
    %1066 = vmatprep.subr.mxu0 0.0
    %1067 = vmatpush1.msra.mxu0 0.0
    %1068 = vmatprep.subr.mxu0 0.0
    %1069 = vmatpush1.msra.mxu0 0.0
    %1070 = vmatprep.subr.mxu0 0.0
    %1071 = vmatpush1.msra.mxu0 0.0
    %1072 = vmatprep.subr.mxu0 0.0
    %1073 = vmatpush1.msra.mxu0 0.0
    %1074 = vmatprep.subr.mxu0 0.0
    %1075 = vmatpush1.msra.mxu0 0.0
    %1076 = vmatprep.subr.mxu0 0.0
    %1077 = vmatpush1.msra.mxu0 0.0
    %1078 = vmatprep.subr.mxu0 0.0
    %1079 = vmatpush1.msra.mxu0 0.0
    %1080 = vmatprep.subr.mxu0 0.0
    %1081 = vmatpush1.msra.mxu0 0.0
    %1082 = vmatprep.subr.mxu0 0.0
    %1083 = vmatpush1.msra.mxu0 0.0
    %1084 = vmatprep.subr.mxu0 0.0
    %1085 = vmatpush1.msra.mxu0 0.0
    %1086 = vmatprep.subr.mxu0 0.0
    %1087 = vmatpush1.msra.mxu0 0.0
    %1088 = vmatprep.subr.mxu0 0.0
    %1089 = vmatpush1.msra.mxu0 0.0
    %1090 = vmatprep.subr.mxu0 0.0
    %1091 = vmatpush1.msra.mxu0 0.0
    %1092 = vmatprep.subr.mxu0 0.0
    %1093 = vmatpush1.msra.mxu0 0.0
    %1094 = vmatprep.mubr.f32.mxu0 0.0
    %1095 = vmatmul.mubr.f32.gmra.mrb[0].mxu0 %v1028
    %v1096 = vpop.f32.mrb[0].mxu0
    %v1097 = vadd.f32 0.0, %v1096
    %v1098 = vpop.f32.mrb[0].mxu0
    %v1099 = vadd.f32 0.0, %v1098
    %1100 = vdwg.mxu0
    %v1103 = vrot.slane %v1097, 4
    %v1104 = vrot.slane %v1099, 4
    %v1107 = vadd.f32 %v140, %v1103
    %v1108 = vadd.f32 %v737, %v1104
    %v1109 = vxor.u32 %v1107, 2147483648
    %v1110 = vmul.f32 %v1109, 1.442695
    %v1111 = vpow.pop %v1110
    %v1112 = vadd.f32 %v1111, 1.0
    %v1113 = vrcp.pop %v1112
    %v1114 = vmul.f32 1.0, %v1113
    %v1115 = vtanh.pop %v1107
    %v1117 = vrot.slane %v983, 6
    %v1119 = vmul.f32 %v1114, %v1117
    %1121 = vrot.lane.b32.xlu0 %v1115, 64
    %v1122 = vpop.permute.xlu0 %1121
    %v1124 = vmul.f32 %v1114, %v1122
    %1126 = vrot.lane.b32.xlu0 %v1124, 32
    %v1127 = vpop.permute.xlu0 %1126
    %v1129 = vadd.f32 %v1119, %v1127
    %v1130 = vtanh.pop %v1129
    %1132 = vrot.lane.b32.xlu0 %v1130, 64
    %v1133 = vpop.permute.xlu0 %1132
    %v1135 = vmul.f32 %v1114, %v1133
    %v1136 = vxor.u32 %v1108, 2147483648
    %v1137 = vmul.f32 %v1136, 1.442695
    %v1138 = vpow.pop %v1137
    %v1139 = vadd.f32 %v1138, 1.0
    %v1140 = vrcp.pop %v1139
    %v1141 = vmul.f32 1.0, %v1140
    %v1142 = vtanh.pop %v1108
    %v1144 = vrot.slane %v1010, 6
    %v1146 = vmul.f32 %v1141, %v1144
    %1148 = vrot.lane.b32.xlu0 %v1142, 64
    %v1149 = vpop.permute.xlu0 %1148
    %v1151 = vmul.f32 %v1141, %v1149
    %1153 = vrot.lane.b32.xlu0 %v1151, 32
    %v1154 = vpop.permute.xlu0 %1153
    %v1156 = vadd.f32 %v1146, %v1154
    %v1157 = vtanh.pop %v1156
    %1159 = vrot.lane.b32.xlu0 %v1157, 64
    %v1160 = vpop.permute.xlu0 %1159
    %v1162 = vmul.f32 %v1141, %v1160
    %1164 = vrot.lane.b32.xlu0 %v1135, 32
    %v1165 = vpop.permute.xlu0 %1164
    %1168 = vrot.lane.b32.xlu0 %v1162, 64
    %v1169 = vpop.permute.xlu0 %1168
    %v1171 = vsel %vm60, %v1165, %v1169
    %v1173 = vrot.slane %v1171, 4
    %v1174 = vsel %vm163, %v1173, 0
    %1176 = vmatprep.subr.mxu0 %v145
    %1177 = vmatpush1.msra.mxu0 %v144
    %1178 = vmatprep.subr.mxu0 %v147
    %1179 = vmatpush1.msra.mxu0 %v146
    %1180 = vmatprep.subr.mxu0 %v149
    %1181 = vmatpush1.msra.mxu0 %v148
    %1182 = vmatprep.subr.mxu0 %v151
    %1183 = vmatpush1.msra.mxu0 %v150
    %1184 = vmatprep.subr.mxu0 %v153
    %1185 = vmatpush1.msra.mxu0 %v152
    %1186 = vmatprep.subr.mxu0 %v155
    %1187 = vmatpush1.msra.mxu0 %v154
    %1188 = vmatprep.subr.mxu0 %v157
    %1189 = vmatpush1.msra.mxu0 %v156
    %1190 = vmatprep.subr.mxu0 %v159
    %1191 = vmatpush1.msra.mxu0 %v158
    %1192 = vmatprep.subr.mxu0 0.0
    %1193 = vmatpush1.msra.mxu0 0.0
    %1194 = vmatprep.subr.mxu0 0.0
    %1195 = vmatpush1.msra.mxu0 0.0
    %1196 = vmatprep.subr.mxu0 0.0
    %1197 = vmatpush1.msra.mxu0 0.0
    %1198 = vmatprep.subr.mxu0 0.0
    %1199 = vmatpush1.msra.mxu0 0.0
    %1200 = vmatprep.subr.mxu0 0.0
    %1201 = vmatpush1.msra.mxu0 0.0
    %1202 = vmatprep.subr.mxu0 0.0
    %1203 = vmatpush1.msra.mxu0 0.0
    %1204 = vmatprep.subr.mxu0 0.0
    %1205 = vmatpush1.msra.mxu0 0.0
    %1206 = vmatprep.subr.mxu0 0.0
    %1207 = vmatpush1.msra.mxu0 0.0
    %1208 = vmatprep.subr.mxu0 0.0
    %1209 = vmatpush1.msra.mxu0 0.0
    %1210 = vmatprep.subr.mxu0 0.0
    %1211 = vmatpush1.msra.mxu0 0.0
    %1212 = vmatprep.subr.mxu0 0.0
    %1213 = vmatpush1.msra.mxu0 0.0
    %1214 = vmatprep.subr.mxu0 0.0
    %1215 = vmatpush1.msra.mxu0 0.0
    %1216 = vmatprep.subr.mxu0 0.0
    %1217 = vmatpush1.msra.mxu0 0.0
    %1218 = vmatprep.subr.mxu0 0.0
    %1219 = vmatpush1.msra.mxu0 0.0
    %1220 = vmatprep.subr.mxu0 0.0
    %1221 = vmatpush1.msra.mxu0 0.0
    %1222 = vmatprep.subr.mxu0 0.0
    %1223 = vmatpush1.msra.mxu0 0.0
    %1224 = vmatprep.subr.mxu0 0.0
    %1225 = vmatpush1.msra.mxu0 0.0
    %1226 = vmatprep.subr.mxu0 0.0
    %1227 = vmatpush1.msra.mxu0 0.0
    %1228 = vmatprep.subr.mxu0 0.0
    %1229 = vmatpush1.msra.mxu0 0.0
    %1230 = vmatprep.subr.mxu0 0.0
    %1231 = vmatpush1.msra.mxu0 0.0
    %1232 = vmatprep.subr.mxu0 0.0
    %1233 = vmatpush1.msra.mxu0 0.0
    %1234 = vmatprep.subr.mxu0 0.0
    %1235 = vmatpush1.msra.mxu0 0.0
    %1236 = vmatprep.subr.mxu0 0.0
    %1237 = vmatpush1.msra.mxu0 0.0
    %1238 = vmatprep.subr.mxu0 0.0
    %1239 = vmatpush1.msra.mxu0 0.0
    %1240 = vmatprep.mubr.f32.mxu0 0.0
    %1241 = vmatmul.mubr.f32.gmra.mrb[0].mxu0 %v1174
    %v1242 = vpop.f32.mrb[0].mxu0
    %v1243 = vadd.f32 0.0, %v1242
    %v1244 = vpop.f32.mrb[0].mxu0
    %v1245 = vadd.f32 0.0, %v1244
    %1246 = vdwg.mxu0
    %v1249 = vrot.slane %v1243, 2
    %v1250 = vrot.slane %v1245, 2
    %v1253 = vadd.f32 %v140, %v1249
    %v1254 = vadd.f32 %v879, %v1250
    %v1255 = vxor.u32 %v1253, 2147483648
    %v1256 = vmul.f32 %v1255, 1.442695
    %v1257 = vpow.pop %v1256
    %v1258 = vadd.f32 %v1257, 1.0
    %v1259 = vrcp.pop %v1258
    %v1260 = vmul.f32 1.0, %v1259
    %v1261 = vtanh.pop %v1253
    %v1263 = vrot.slane %v1129, 6
    %v1265 = vmul.f32 %v1260, %v1263
    %1267 = vrot.lane.b32.xlu0 %v1261, 64
    %v1268 = vpop.permute.xlu0 %1267
    %v1270 = vmul.f32 %v1260, %v1268
    %1272 = vrot.lane.b32.xlu0 %v1270, 32
    %v1273 = vpop.permute.xlu0 %1272
    %v1275 = vadd.f32 %v1265, %v1273
    %v1276 = vtanh.pop %v1275
    %1278 = vrot.lane.b32.xlu0 %v1276, 64
    %v1279 = vpop.permute.xlu0 %1278
    %v1281 = vmul.f32 %v1260, %v1279
    %v1282 = vxor.u32 %v1254, 2147483648
    %v1283 = vmul.f32 %v1282, 1.442695
    %v1284 = vpow.pop %v1283
    %v1285 = vadd.f32 %v1284, 1.0
    %v1286 = vrcp.pop %v1285
    %v1287 = vmul.f32 1.0, %v1286
    %v1288 = vtanh.pop %v1254
    %v1290 = vrot.slane %v1156, 6
    %v1292 = vmul.f32 %v1287, %v1290
    %1294 = vrot.lane.b32.xlu0 %v1288, 64
    %v1295 = vpop.permute.xlu0 %1294
    %v1297 = vmul.f32 %v1287, %v1295
    %1299 = vrot.lane.b32.xlu0 %v1297, 32
    %v1300 = vpop.permute.xlu0 %1299
    %v1302 = vadd.f32 %v1292, %v1300
    %v1303 = vtanh.pop %v1302
    %1305 = vrot.lane.b32.xlu0 %v1303, 64
    %v1306 = vpop.permute.xlu0 %1305
    %v1308 = vmul.f32 %v1287, %v1306
    %vm1309 = vcmask 1041408
    %v1310 = vsel %vm1309, %v263, %v407
    %vm1311 = vcmask 1043456
    %v1312 = vsel %vm1311, %v1310, %v553
    %vm1313 = vcmask 1045504
    %v1314 = vsel %vm1313, %v1312, %v699
    %v1315 = vsel %vm1309, %v842, %v989
    %v1316 = vsel %vm1311, %v1315, %v1135
    %v1317 = vsel %vm1313, %v1316, %v1281
    %v1319 = vrot.slane %v1308, 6
    %v1321 = vrot.slane %v1162, 2
    %v1323 = vrot.slane %v1016, 6
    %v1325 = vrot.slane %v869, 2
    %v1327 = vrot.slane %v726, 6
    %v1329 = vrot.slane %v580, 2
    %v1331 = vrot.slane %v434, 6
    %v1333 = vrot.slane %v287, 2
    %v1335 = vsel %vm1309, %v1319, %v1321
    %v1336 = vsel %vm1311, %v1335, %v1323
    %v1337 = vsel %vm1313, %v1336, %v1325
    %v1338 = vsel %vm1309, %v1327, %v1329
    %v1339 = vsel %vm1311, %v1338, %v1331
    %v1340 = vsel %vm1313, %v1339, %v1333
    %1343 = vrot.lane.b32.xlu0 %v1314, 32
    %v1344 = vpop.permute.xlu0 %1343
    %1345 = vrot.lane.b32.xlu0 %v1317, 32
    %v1346 = vpop.permute.xlu0 %1345
    %1351 = vrot.lane.b32.xlu0 %v1337, 64
    %v1352 = vpop.permute.xlu0 %1351
    %1353 = vrot.lane.b32.xlu0 %v1340, 64
    %v1354 = vpop.permute.xlu0 %1353
    %v1357 = vsel %vm60, %v1344, %v1352
    %v1358 = vsel %vm60, %v1346, %v1354
    %v1359 = vld [vmem:[%s4] sm:$0xff]
    %v1360 = vld [vmem:[%s4 + $0x8] sm:$0xff]
    %v1361 = vld [vmem:[%s4 + $0x10] sm:$0xff]
    %v1362 = vld [vmem:[%s4 + $0x18] sm:$0xff]
    %v1363 = vld [vmem:[%s4 + $0x20] sm:$0xff]
    %v1364 = vld [vmem:[%s4 + $0x28] sm:$0xff]
    %v1365 = vld [vmem:[%s4 + $0x30] sm:$0xff]
    %v1366 = vld [vmem:[%s4 + $0x38] sm:$0xff]
    %v1367 = vld [vmem:[%s5] sm:$0x1]
    %v1369 = vlaneseq
    %v1370 = vshrl.u32 %v1369, 7
    %v1371 = vsub.s32 0, %v1370
    %v1372 = vrot.slane %v1367, %v1371
    %v1375 = vsel %vm163, %v1357, 0
    %v1378 = vsel %vm163, %v1358, 0
    %1380 = vmatprep.subr.mxu0 0.0
    %1381 = vmatpush1.msra.mxu0 %v1359
    %1382 = vmatprep.subr.mxu0 0.0
    %1383 = vmatpush1.msra.mxu0 %v1360
    %1384 = vmatprep.subr.mxu0 0.0
    %1385 = vmatpush1.msra.mxu0 %v1361
    %1386 = vmatprep.subr.mxu0 0.0
    %1387 = vmatpush1.msra.mxu0 %v1362
    %1388 = vmatprep.subr.mxu0 0.0
    %1389 = vmatpush1.msra.mxu0 %v1363
    %1390 = vmatprep.subr.mxu0 0.0
    %1391 = vmatpush1.msra.mxu0 %v1364
    %1392 = vmatprep.subr.mxu0 0.0
    %1393 = vmatpush1.msra.mxu0 %v1365
    %1394 = vmatprep.subr.mxu0 0.0
    %1395 = vmatpush1.msra.mxu0 %v1366
    %1396 = vmatprep.subr.mxu0 0.0
    %1397 = vmatpush1.msra.mxu0 0.0
    %1398 = vmatprep.subr.mxu0 0.0
    %1399 = vmatpush1.msra.mxu0 0.0
    %1400 = vmatprep.subr.mxu0 0.0
    %1401 = vmatpush1.msra.mxu0 0.0
    %1402 = vmatprep.subr.mxu0 0.0
    %1403 = vmatpush1.msra.mxu0 0.0
    %1404 = vmatprep.subr.mxu0 0.0
    %1405 = vmatpush1.msra.mxu0 0.0
    %1406 = vmatprep.subr.mxu0 0.0
    %1407 = vmatpush1.msra.mxu0 0.0
    %1408 = vmatprep.subr.mxu0 0.0
    %1409 = vmatpush1.msra.mxu0 0.0
    %1410 = vmatprep.subr.mxu0 0.0
    %1411 = vmatpush1.msra.mxu0 0.0
    %1412 = vmatprep.subr.mxu0 0.0
    %1413 = vmatpush1.msra.mxu0 0.0
    %1414 = vmatprep.subr.mxu0 0.0
    %1415 = vmatpush1.msra.mxu0 0.0
    %1416 = vmatprep.subr.mxu0 0.0
    %1417 = vmatpush1.msra.mxu0 0.0
    %1418 = vmatprep.subr.mxu0 0.0
    %1419 = vmatpush1.msra.mxu0 0.0
    %1420 = vmatprep.subr.mxu0 0.0
    %1421 = vmatpush1.msra.mxu0 0.0
    %1422 = vmatprep.subr.mxu0 0.0
    %1423 = vmatpush1.msra.mxu0 0.0
    %1424 = vmatprep.subr.mxu0 0.0
    %1425 = vmatpush1.msra.mxu0 0.0
    %1426 = vmatprep.subr.mxu0 0.0
    %1427 = vmatpush1.msra.mxu0 0.0
    %1428 = vmatprep.subr.mxu0 0.0
    %1429 = vmatpush1.msra.mxu0 0.0
    %1430 = vmatprep.subr.mxu0 0.0
    %1431 = vmatpush1.msra.mxu0 0.0
    %1432 = vmatprep.subr.mxu0 0.0
    %1433 = vmatpush1.msra.mxu0 0.0
    %1434 = vmatprep.subr.mxu0 0.0
    %1435 = vmatpush1.msra.mxu0 0.0
    %1436 = vmatprep.subr.mxu0 0.0
    %1437 = vmatpush1.msra.mxu0 0.0
    %1438 = vmatprep.subr.mxu0 0.0
    %1439 = vmatpush1.msra.mxu0 0.0
    %1440 = vmatprep.subr.mxu0 0.0
    %1441 = vmatpush1.msra.mxu0 0.0
    %1442 = vmatprep.subr.mxu0 0.0
    %1443 = vmatpush1.msra.mxu0 0.0
    %1444 = vmatprep.mubr.f32.mxu0 0.0
    %1445 = vmatmul.mubr.f32.gmra.mrb[0].mxu0 %v1375
    %v1446 = vpop.f32.mrb[0].mxu0
    %v1447 = vadd.f32 %v1372, %v1446
    %v1448 = vpop.f32.mrb[0].mxu0
    %1449 = vmatprep.mubr.f32.mxu0 0.0
    %1450 = vmatmul.mubr.f32.gmra.mrb[0].mxu0 %v1378
    %v1451 = vpop.f32.mrb[0].mxu0
    %v1452 = vadd.f32 %v1372, %v1451
    %v1453 = vpop.f32.mrb[0].mxu0
    %1454 = vdwg.mxu0
    %vm1455 = vcmask 130048
    %1456 = vst.msk [vmem:[#allocation5] sm:$0xff] %vm1455, %v1447
    %1457 = vst.msk [vmem:[#allocation5 + $0x8] sm:$0xff] %vm1455, %v1452
    // Predicated region
    $region30: #{bidirectional_lstm_forward.1} parent=1 // pred_check
      _
    $region31: #{bidirectional_lstm_forward.1} parent=1 // pred_check_branch
      %1459 = sbr.rel (0) target = $region33
    $region32: #{bidirectional_lstm_forward.1} parent=1 // pred_region
      %s1461 = ssub.s32 256, 256
      %1462 = vsyncadd [#allocation4], %s1461
      %s1463 = sshll.u32 [#allocation5], 4
      %s1464 = int_to_ptr.vmem [resolvable:$true] %s1463
      %1469 = dma.vmem_to_hbm [thread:$0]  %s1464, 256, %s6, [#allocation4], 128, 128, 8
    $region33: #{bidirectional_lstm_forward.1} parent=1 // pred_fallthru
      _
    // Predicated region
    $region34: #{bidirectional_lstm_forward.1} parent=1 // pred_check
      _
    $region35: #{bidirectional_lstm_forward.1} parent=1 // pred_check_branch
      %1471 = sbr.rel (0) target = $region37
    $region36: #{bidirectional_lstm_forward.1} parent=1 // pred_region
      %1472 = dma.done [#allocation4], 256
    $region37: #{bidirectional_lstm_forward.1} parent=1 // pred_fallthru
      _
    %1473 = vsyncpa [#allocation3], 1
    %1474 = vsyncpa [#allocation4], 1

</llo_original>
